<compile_context>
chip_gen: v7x
topology: tpu7x:2x2x1
jax: 0.10.0
libtpu: 0.0.40
codegen_flags: <defaults>
</compile_context>

<pallas_src>
import functools

import jax
import jax.numpy as jnp
from jax.experimental import pallas as pl
from jax.experimental.pallas import tpu as pltpu

EMB_DIM = 300


def _bilstm_kernel(x_ref, mask_ref, wih_ref, whh_f_ref, whh_b_ref, b_ref,
                   wout_ref, bout_ref, out_ref, *, T, B, H):
    """Full BiLSTM + Linear head in one body.

    Row convention for flat refs/values: row = t * B + b (time-major).
    """
    H4 = 4 * H

    # (1) Shared hoisted input->gate projection for BOTH directions and ALL
    #     timesteps: one bf16 MXU matmul, combined biases folded in.
    pre = (jnp.dot(x_ref[...], wih_ref[...],
                   preferred_element_type=jnp.float32)
           + b_ref[...])                                   # [TB, 8H] f32
    pre_f = pre[:, :H4]
    pre_b = pre[:, H4:]

    # Hoisted weight reads / mask compare (kept out of the serial recurrence).
    whh_f = whh_f_ref[...]                                 # [H, 4H] bf16
    whh_b = whh_b_ref[...]
    valid = mask_ref[...] > 0.0                            # [TB, 1] bool

    # (2) Interleaved forward/backward recurrence, fully unrolled (T small &
    #     static).  Only a [B,H] @ [H,4H] bf16 dot per direction is serial;
    #     states are vreg-resident.
    h_f = jnp.zeros((B, H), jnp.float32)
    c_f = jnp.zeros((B, H), jnp.float32)
    h_b = jnp.zeros((B, H), jnp.float32)
    c_b = jnp.zeros((B, H), jnp.float32)
    outs_f = [None] * T
    outs_b = [None] * T
    for s in range(T):
        tb = T - 1 - s                 # backward direction walks time in reverse
        g_f = pre_f[s * B:(s + 1) * B, :] + jnp.dot(
            h_f.astype(jnp.bfloat16), whh_f, preferred_element_type=jnp.float32)
        g_b = pre_b[tb * B:(tb + 1) * B, :] + jnp.dot(
            h_b.astype(jnp.bfloat16), whh_b, preferred_element_type=jnp.float32)
        # One sigmoid + one tanh over the whole [B, 4H] gate block per
        # direction; slices afterwards are cheap.
        sg_f, th_f = jax.nn.sigmoid(g_f), jnp.tanh(g_f)
        sg_b, th_b = jax.nn.sigmoid(g_b), jnp.tanh(g_b)
        c_f_new = sg_f[:, H:2 * H] * c_f + sg_f[:, :H] * th_f[:, 2 * H:3 * H]
        c_b_new = sg_b[:, H:2 * H] * c_b + sg_b[:, :H] * th_b[:, 2 * H:3 * H]
        h_f_new = sg_f[:, 3 * H:] * jnp.tanh(c_f_new)
        h_b_new = sg_b[:, 3 * H:] * jnp.tanh(c_b_new)
        m_f = valid[s * B:(s + 1) * B, :]                  # [B, 1] bool
        m_b = valid[tb * B:(tb + 1) * B, :]
        h_f = jnp.where(m_f, h_f_new, h_f)                 # freeze state when padded
        c_f = jnp.where(m_f, c_f_new, c_f)
        h_b = jnp.where(m_b, h_b_new, h_b)
        c_b = jnp.where(m_b, c_b_new, c_b)
        outs_f[s] = jnp.where(m_f, h_f_new, 0.0)           # padded outputs -> 0
        outs_b[tb] = jnp.where(m_b, h_b_new, 0.0)

    # (3) Fused output projection and single logits store.
    hcat = jnp.concatenate(
        [jnp.concatenate([outs_f[t], outs_b[t]], axis=1) for t in range(T)],
        axis=0)                                            # [TB, 2H] f32
    out_ref[...] = (jnp.dot(hcat.astype(jnp.bfloat16), wout_ref[...],
                            preferred_element_type=jnp.float32)
                    + bout_ref[...])


def ner_forward(x_bte, lengths, p):
    """x_bte: [B, T, 300] float32 embeddings, lengths: [B] int. Returns [B, T, C]."""
    B, T, E = x_bte.shape
    H4 = p["whh_f"].shape[-1]
    H = H4 // 4
    C = p["bout"].shape[-1]
    TB = T * B

    # Time-major flat layout (row = t*B + b); bf16 MXU operands, f32 biases.
    x_flat = jnp.transpose(x_bte, (1, 0, 2)).reshape(TB, E).astype(jnp.bfloat16)
    mask = (jnp.arange(T)[:, None] < lengths.astype(jnp.int32)[None, :]
            ).astype(jnp.float32).reshape(TB, 1)
    wih = jnp.concatenate([p["wih_f"], p["wih_b"]], axis=1).astype(jnp.bfloat16)
    bias = jnp.concatenate([p["b_f"], p["b_b"]], axis=1)          # [1, 8H] f32
    whh_f = p["whh_f"].astype(jnp.bfloat16)
    whh_b = p["whh_b"].astype(jnp.bfloat16)
    wout = p["wout"].astype(jnp.bfloat16)                         # [2H, C]
    bout = p["bout"]                                              # [1, C] f32

    kernel = functools.partial(_bilstm_kernel, T=T, B=B, H=H)

    flops = (2 * TB * E * 2 * H4          # shared input projection
             + 4 * T * B * H * H4         # two recurrent dots per step
             + 2 * TB * 2 * H * C)        # output projection
    bytes_accessed = (2 * (x_flat.size + wih.size + whh_f.size + whh_b.size
                           + wout.size)
                      + 4 * (mask.size + bias.size + bout.size + TB * C))
    cost = pl.CostEstimate(flops=int(flops),
                           transcendentals=int(2 * T * B * 9 * H),
                           bytes_accessed=int(bytes_accessed))

    vmem = pl.BlockSpec(memory_space=pltpu.MemorySpace.VMEM)
    logits_flat = pl.pallas_call(
        kernel,
        out_shape=jax.ShapeDtypeStruct((TB, C), jnp.float32),
        in_specs=[vmem] * 8,
        out_specs=vmem,
        cost_estimate=cost,
    )(x_flat, mask, wih, whh_f, whh_b, bias, wout, bout)

    return jnp.transpose(logits_flat.reshape(T, B, C), (1, 0, 2))  # [B, T, C]


def make_params(key, hidden_dim, num_classes, emb_dim=EMB_DIM):
    """Deterministic params, LSTM gate weights fused along the last dim
    (order i, f, g, o): wih_*: [E, 4H], whh_*: [H, 4H], b_*: [1, 4H]
    (bias_ih + bias_hh combined).  Linear: wout [2H, C] (fwd rows then bwd
    rows) + bout [1, C]."""
    H, C, E = hidden_dim, num_classes, emb_dim
    k = 1.0 / jnp.sqrt(jnp.float32(H))
    kl = 1.0 / jnp.sqrt(jnp.float32(2 * H))
    keys = jax.random.split(key, 10)

    def u(kk, shape, scale):
        return jax.random.uniform(kk, shape, jnp.float32, -scale, scale)

    return dict(
        wih_f=u(keys[0], (E, 4 * H), k),
        whh_f=u(keys[1], (H, 4 * H), k),
        b_f=u(keys[2], (1, 4 * H), k) + u(keys[3], (1, 4 * H), k),
        wih_b=u(keys[4], (E, 4 * H), k),
        whh_b=u(keys[5], (H, 4 * H), k),
        b_b=u(keys[6], (1, 4 * H), k) + u(keys[7], (1, 4 * H), k),
        wout=u(keys[8], (2 * H, C), kl),
        bout=u(keys[9], (1, C), kl),
    )


def ner_reference(x_bte, lengths, p):
    """Pure-JAX f32 reference mirroring PyTorch packed BiLSTM + Linear."""
    B, T, _E = x_bte.shape
    H = p["whh_f"].shape[0]

    def run(wih, whh, b, reverse):
        h = jnp.zeros((B, H), jnp.float32)
        c = jnp.zeros((B, H), jnp.float32)
        outs = [None] * T
        order = range(T - 1, -1, -1) if reverse else range(T)
        for t in order:
            gates = x_bte[:, t, :] @ wih + h @ whh + b
            i_g = jax.nn.sigmoid(gates[:, :H])
            f_g = jax.nn.sigmoid(gates[:, H:2 * H])
            g_g = jnp.tanh(gates[:, 2 * H:3 * H])
            o_g = jax.nn.sigmoid(gates[:, 3 * H:])
            c_new = f_g * c + i_g * g_g
            h_new = o_g * jnp.tanh(c_new)
            m = (t < lengths).astype(jnp.float32)[:, None]
            h = m * h_new + (1.0 - m) * h
            c = m * c_new + (1.0 - m) * c
            outs[t] = m * h_new
        return jnp.stack(outs, axis=1)  # [B, T, H]

    hf = run(p["wih_f"], p["whh_f"], p["b_f"], False)
    hb = run(p["wih_b"], p["whh_b"], p["b_b"], True)
    return jnp.concatenate([hf, hb], axis=-1) @ p["wout"] + p["bout"]


if __name__ == "__main__":
    B, T, H, C = 2, 8, 32, 5
    key = jax.random.PRNGKey(0)
    k_x, k_p = jax.random.split(key)

    # Stand-in for embedding_model.get_word_vector applied to token strings.
    x = jax.random.normal(k_x, (B, T, EMB_DIM), dtype=jnp.float32)
    lengths = jnp.array([8, 5], dtype=jnp.int32)
    # Zero padded positions in the input, matching pad_sequence(padding_value=0).
    pad_mask = (jnp.arange(T)[None, :] < lengths[:, None]).astype(jnp.float32)
    x = x * pad_mask[:, :, None]

    params = make_params(k_p, H, C)

    logits = jax.block_until_ready(ner_forward(x, lengths, params))
    ref = jax.block_until_ready(ner_reference(x, lengths, params))

    assert logits.shape == (B, T, C), logits.shape
    assert bool(jnp.all(jnp.isfinite(logits)))
    # bf16 MXU operands vs f32 reference -> slightly looser tolerance.
    assert bool(jnp.allclose(logits, ref, rtol=3e-2, atol=3e-2)), (
        float(jnp.max(jnp.abs(logits - ref))))
    print("KERNEL_OK")
</pallas_src>

<mosaic_0001>
module attributes {stable_mosaic.version = 11 : i64} {
  func.func @_bilstm_kernel(%arg0: memref<16x300xbf16, #tpu.memory_space<vmem>>, %arg1: memref<16x1xf32, #tpu.memory_space<vmem>>, %arg2: memref<300x256xbf16, #tpu.memory_space<vmem>>, %arg3: memref<32x128xbf16, #tpu.memory_space<vmem>>, %arg4: memref<32x128xbf16, #tpu.memory_space<vmem>>, %arg5: memref<1x256xf32, #tpu.memory_space<vmem>>, %arg6: memref<64x5xbf16, #tpu.memory_space<vmem>>, %arg7: memref<1x5xf32, #tpu.memory_space<vmem>>, %arg8: memref<16x5xf32, #tpu.memory_space<vmem>>) attributes {dimension_semantics = [], scalar_prefetch = 0 : i64, scratch_operands = 0 : i64, tpu.core_type = #tpu.core_type<tc>} {
    %c0 = arith.constant 0 : index
    %c0_0 = arith.constant 0 : index
    %0 = vector.load %arg0[%c0, %c0_0] : memref<16x300xbf16, #tpu.memory_space<vmem>>, vector<16x300xbf16>
    %c0_1 = arith.constant 0 : index
    %c0_2 = arith.constant 0 : index
    %1 = vector.load %arg2[%c0_1, %c0_2] : memref<300x256xbf16, #tpu.memory_space<vmem>>, vector<300x256xbf16>
    %cst = arith.constant dense<0.000000e+00> : vector<16x256xf32>
    %2 = tpu.matmul %0, %1, %cst {dimension_numbers = #tpu.dot_dimension_numbers<[1], [0], [0], [1], [0, 0, 1, 1], [], []>} : vector<16x300xbf16>, vector<300x256xbf16>, vector<16x256xf32> -> vector<16x256xf32>
    %c0_3 = arith.constant 0 : index
    %c0_4 = arith.constant 0 : index
    %3 = vector.load %arg5[%c0_3, %c0_4] : memref<1x256xf32, #tpu.memory_space<vmem>>, vector<1x256xf32>
    %4 = vector.broadcast %3 : vector<1x256xf32> to vector<16x256xf32>
    %5 = arith.addf %2, %4 : vector<16x256xf32>
    %6 = vector.extract_strided_slice %5 {offsets = [0, 0], sizes = [16, 128], strides = [1, 1]} : vector<16x256xf32> to vector<16x128xf32>
    %7 = vector.extract_strided_slice %5 {offsets = [0, 128], sizes = [16, 128], strides = [1, 1]} : vector<16x256xf32> to vector<16x128xf32>
    %c0_5 = arith.constant 0 : index
    %c0_6 = arith.constant 0 : index
    %8 = vector.load %arg3[%c0_5, %c0_6] : memref<32x128xbf16, #tpu.memory_space<vmem>>, vector<32x128xbf16>
    %c0_7 = arith.constant 0 : index
    %c0_8 = arith.constant 0 : index
    %9 = vector.load %arg4[%c0_7, %c0_8] : memref<32x128xbf16, #tpu.memory_space<vmem>>, vector<32x128xbf16>
    %c0_9 = arith.constant 0 : index
    %c0_10 = arith.constant 0 : index
    %10 = vector.load %arg1[%c0_9, %c0_10] : memref<16x1xf32, #tpu.memory_space<vmem>>, vector<16x1xf32>
    %cst_11 = arith.constant 0.000000e+00 : f32
    %11 = vector.broadcast %cst_11 : f32 to vector<16x1xf32>
    %12 = arith.cmpf ogt, %10, %11 : vector<16x1xf32>
    %cst_12 = arith.constant 0.000000e+00 : f32
    %13 = vector.broadcast %cst_12 : f32 to vector<2x32xf32>
    %cst_13 = arith.constant 0.000000e+00 : f32
    %14 = vector.broadcast %cst_13 : f32 to vector<2x32xf32>
    %cst_14 = arith.constant 0.000000e+00 : f32
    %15 = vector.broadcast %cst_14 : f32 to vector<2x32xf32>
    %cst_15 = arith.constant 0.000000e+00 : f32
    %16 = vector.broadcast %cst_15 : f32 to vector<2x32xf32>
    %17 = vector.extract_strided_slice %6 {offsets = [0, 0], sizes = [2, 128], strides = [1, 1]} : vector<16x128xf32> to vector<2x128xf32>
    %18 = arith.truncf %13 : vector<2x32xf32> to vector<2x32xbf16>
    %cst_16 = arith.constant dense<0.000000e+00> : vector<2x128xf32>
    %19 = tpu.matmul %18, %8, %cst_16 {dimension_numbers = #tpu.dot_dimension_numbers<[1], [0], [0], [1], [0, 0, 1, 1], [], []>} : vector<2x32xbf16>, vector<32x128xbf16>, vector<2x128xf32> -> vector<2x128xf32>
    %20 = arith.addf %17, %19 : vector<2x128xf32>
    %21 = vector.extract_strided_slice %7 {offsets = [14, 0], sizes = [2, 128], strides = [1, 1]} : vector<16x128xf32> to vector<2x128xf32>
    %22 = arith.truncf %15 : vector<2x32xf32> to vector<2x32xbf16>
    %cst_17 = arith.constant dense<0.000000e+00> : vector<2x128xf32>
    %23 = tpu.matmul %22, %9, %cst_17 {dimension_numbers = #tpu.dot_dimension_numbers<[1], [0], [0], [1], [0, 0, 1, 1], [], []>} : vector<2x32xbf16>, vector<32x128xbf16>, vector<2x128xf32> -> vector<2x128xf32>
    %24 = arith.addf %21, %23 : vector<2x128xf32>
    %25 = arith.negf %20 : vector<2x128xf32>
    %26 = math.exp %25 : vector<2x128xf32>
    %cst_18 = arith.constant 1.000000e+00 : f32
    %27 = vector.broadcast %cst_18 : f32 to vector<2x128xf32>
    %28 = arith.addf %27, %26 : vector<2x128xf32>
    %29 = arith.divf %27, %28 : vector<2x128xf32>
    %30 = math.tanh %20 : vector<2x128xf32>
    %31 = arith.negf %24 : vector<2x128xf32>
    %32 = math.exp %31 : vector<2x128xf32>
    %cst_19 = arith.constant 1.000000e+00 : f32
    %33 = vector.broadcast %cst_19 : f32 to vector<2x128xf32>
    %34 = arith.addf %33, %32 : vector<2x128xf32>
    %35 = arith.divf %33, %34 : vector<2x128xf32>
    %36 = math.tanh %24 : vector<2x128xf32>
    %37 = vector.extract_strided_slice %29 {offsets = [0, 32], sizes = [2, 32], strides = [1, 1]} : vector<2x128xf32> to vector<2x32xf32>
    %38 = arith.mulf %37, %14 : vector<2x32xf32>
    %39 = vector.extract_strided_slice %29 {offsets = [0, 0], sizes = [2, 32], strides = [1, 1]} : vector<2x128xf32> to vector<2x32xf32>
    %40 = vector.extract_strided_slice %30 {offsets = [0, 64], sizes = [2, 32], strides = [1, 1]} : vector<2x128xf32> to vector<2x32xf32>
    %41 = arith.mulf %39, %40 : vector<2x32xf32>
    %42 = arith.addf %38, %41 : vector<2x32xf32>
    %43 = vector.extract_strided_slice %35 {offsets = [0, 32], sizes = [2, 32], strides = [1, 1]} : vector<2x128xf32> to vector<2x32xf32>
    %44 = arith.mulf %43, %16 : vector<2x32xf32>
    %45 = vector.extract_strided_slice %35 {offsets = [0, 0], sizes = [2, 32], strides = [1, 1]} : vector<2x128xf32> to vector<2x32xf32>
    %46 = vector.extract_strided_slice %36 {offsets = [0, 64], sizes = [2, 32], strides = [1, 1]} : vector<2x128xf32> to vector<2x32xf32>
    %47 = arith.mulf %45, %46 : vector<2x32xf32>
    %48 = arith.addf %44, %47 : vector<2x32xf32>
    %49 = vector.extract_strided_slice %29 {offsets = [0, 96], sizes = [2, 32], strides = [1, 1]} : vector<2x128xf32> to vector<2x32xf32>
    %50 = math.tanh %42 : vector<2x32xf32>
    %51 = arith.mulf %49, %50 : vector<2x32xf32>
    %52 = vector.extract_strided_slice %35 {offsets = [0, 96], sizes = [2, 32], strides = [1, 1]} : vector<2x128xf32> to vector<2x32xf32>
    %53 = math.tanh %48 : vector<2x32xf32>
    %54 = arith.mulf %52, %53 : vector<2x32xf32>
    %55 = vector.extract_strided_slice %12 {offsets = [0, 0], sizes = [2, 1], strides = [1, 1]} : vector<16x1xi1> to vector<2x1xi1>
    %56 = vector.extract_strided_slice %12 {offsets = [14, 0], sizes = [2, 1], strides = [1, 1]} : vector<16x1xi1> to vector<2x1xi1>
    %57 = vector.shape_cast %55 : vector<2x1xi1> to vector<2x1xi1>
    %58 = vector.broadcast %57 : vector<2x1xi1> to vector<2x32xi1>
    %59 = arith.select %58, %51, %13 : vector<2x32xi1>, vector<2x32xf32>
    %60 = vector.shape_cast %55 : vector<2x1xi1> to vector<2x1xi1>
    %61 = vector.broadcast %60 : vector<2x1xi1> to vector<2x32xi1>
    %62 = arith.select %61, %42, %14 : vector<2x32xi1>, vector<2x32xf32>
    %63 = vector.shape_cast %56 : vector<2x1xi1> to vector<2x1xi1>
    %64 = vector.broadcast %63 : vector<2x1xi1> to vector<2x32xi1>
    %65 = arith.select %64, %54, %15 : vector<2x32xi1>, vector<2x32xf32>
    %66 = vector.shape_cast %56 : vector<2x1xi1> to vector<2x1xi1>
    %67 = vector.broadcast %66 : vector<2x1xi1> to vector<2x32xi1>
    %68 = arith.select %67, %48, %16 : vector<2x32xi1>, vector<2x32xf32>
    %cst_20 = arith.constant 0.000000e+00 : f32
    %69 = vector.shape_cast %55 : vector<2x1xi1> to vector<2x1xi1>
    %70 = vector.broadcast %69 : vector<2x1xi1> to vector<2x32xi1>
    %71 = vector.broadcast %cst_20 : f32 to vector<2x32xf32>
    %72 = arith.select %70, %51, %71 : vector<2x32xi1>, vector<2x32xf32>
    %cst_21 = arith.constant 0.000000e+00 : f32
    %73 = vector.shape_cast %56 : vector<2x1xi1> to vector<2x1xi1>
    %74 = vector.broadcast %73 : vector<2x1xi1> to vector<2x32xi1>
    %75 = vector.broadcast %cst_21 : f32 to vector<2x32xf32>
    %76 = arith.select %74, %54, %75 : vector<2x32xi1>, vector<2x32xf32>
    %77 = vector.extract_strided_slice %6 {offsets = [2, 0], sizes = [2, 128], strides = [1, 1]} : vector<16x128xf32> to vector<2x128xf32>
    %78 = arith.truncf %59 : vector<2x32xf32> to vector<2x32xbf16>
    %cst_22 = arith.constant dense<0.000000e+00> : vector<2x128xf32>
    %79 = tpu.matmul %78, %8, %cst_22 {dimension_numbers = #tpu.dot_dimension_numbers<[1], [0], [0], [1], [0, 0, 1, 1], [], []>} : vector<2x32xbf16>, vector<32x128xbf16>, vector<2x128xf32> -> vector<2x128xf32>
    %80 = arith.addf %77, %79 : vector<2x128xf32>
    %81 = vector.extract_strided_slice %7 {offsets = [12, 0], sizes = [2, 128], strides = [1, 1]} : vector<16x128xf32> to vector<2x128xf32>
    %82 = arith.truncf %65 : vector<2x32xf32> to vector<2x32xbf16>
    %cst_23 = arith.constant dense<0.000000e+00> : vector<2x128xf32>
    %83 = tpu.matmul %82, %9, %cst_23 {dimension_numbers = #tpu.dot_dimension_numbers<[1], [0], [0], [1], [0, 0, 1, 1], [], []>} : vector<2x32xbf16>, vector<32x128xbf16>, vector<2x128xf32> -> vector<2x128xf32>
    %84 = arith.addf %81, %83 : vector<2x128xf32>
    %85 = arith.negf %80 : vector<2x128xf32>
    %86 = math.exp %85 : vector<2x128xf32>
    %cst_24 = arith.constant 1.000000e+00 : f32
    %87 = vector.broadcast %cst_24 : f32 to vector<2x128xf32>
    %88 = arith.addf %87, %86 : vector<2x128xf32>
    %89 = arith.divf %87, %88 : vector<2x128xf32>
    %90 = math.tanh %80 : vector<2x128xf32>
    %91 = arith.negf %84 : vector<2x128xf32>
    %92 = math.exp %91 : vector<2x128xf32>
    %cst_25 = arith.constant 1.000000e+00 : f32
    %93 = vector.broadcast %cst_25 : f32 to vector<2x128xf32>
    %94 = arith.addf %93, %92 : vector<2x128xf32>
    %95 = arith.divf %93, %94 : vector<2x128xf32>
    %96 = math.tanh %84 : vector<2x128xf32>
    %97 = vector.extract_strided_slice %89 {offsets = [0, 32], sizes = [2, 32], strides = [1, 1]} : vector<2x128xf32> to vector<2x32xf32>
    %98 = arith.mulf %97, %62 : vector<2x32xf32>
    %99 = vector.extract_strided_slice %89 {offsets = [0, 0], sizes = [2, 32], strides = [1, 1]} : vector<2x128xf32> to vector<2x32xf32>
    %100 = vector.extract_strided_slice %90 {offsets = [0, 64], sizes = [2, 32], strides = [1, 1]} : vector<2x128xf32> to vector<2x32xf32>
    %101 = arith.mulf %99, %100 : vector<2x32xf32>
    %102 = arith.addf %98, %101 : vector<2x32xf32>
    %103 = vector.extract_strided_slice %95 {offsets = [0, 32], sizes = [2, 32], strides = [1, 1]} : vector<2x128xf32> to vector<2x32xf32>
    %104 = arith.mulf %103, %68 : vector<2x32xf32>
    %105 = vector.extract_strided_slice %95 {offsets = [0, 0], sizes = [2, 32], strides = [1, 1]} : vector<2x128xf32> to vector<2x32xf32>
    %106 = vector.extract_strided_slice %96 {offsets = [0, 64], sizes = [2, 32], strides = [1, 1]} : vector<2x128xf32> to vector<2x32xf32>
    %107 = arith.mulf %105, %106 : vector<2x32xf32>
    %108 = arith.addf %104, %107 : vector<2x32xf32>
    %109 = vector.extract_strided_slice %89 {offsets = [0, 96], sizes = [2, 32], strides = [1, 1]} : vector<2x128xf32> to vector<2x32xf32>
    %110 = math.tanh %102 : vector<2x32xf32>
    %111 = arith.mulf %109, %110 : vector<2x32xf32>
    %112 = vector.extract_strided_slice %95 {offsets = [0, 96], sizes = [2, 32], strides = [1, 1]} : vector<2x128xf32> to vector<2x32xf32>
    %113 = math.tanh %108 : vector<2x32xf32>
    %114 = arith.mulf %112, %113 : vector<2x32xf32>
    %115 = vector.extract_strided_slice %12 {offsets = [2, 0], sizes = [2, 1], strides = [1, 1]} : vector<16x1xi1> to vector<2x1xi1>
    %116 = vector.extract_strided_slice %12 {offsets = [12, 0], sizes = [2, 1], strides = [1, 1]} : vector<16x1xi1> to vector<2x1xi1>
    %117 = vector.shape_cast %115 : vector<2x1xi1> to vector<2x1xi1>
    %118 = vector.broadcast %117 : vector<2x1xi1> to vector<2x32xi1>
    %119 = arith.select %118, %111, %59 : vector<2x32xi1>, vector<2x32xf32>
    %120 = vector.shape_cast %115 : vector<2x1xi1> to vector<2x1xi1>
    %121 = vector.broadcast %120 : vector<2x1xi1> to vector<2x32xi1>
    %122 = arith.select %121, %102, %62 : vector<2x32xi1>, vector<2x32xf32>
    %123 = vector.shape_cast %116 : vector<2x1xi1> to vector<2x1xi1>
    %124 = vector.broadcast %123 : vector<2x1xi1> to vector<2x32xi1>
    %125 = arith.select %124, %114, %65 : vector<2x32xi1>, vector<2x32xf32>
    %126 = vector.shape_cast %116 : vector<2x1xi1> to vector<2x1xi1>
    %127 = vector.broadcast %126 : vector<2x1xi1> to vector<2x32xi1>
    %128 = arith.select %127, %108, %68 : vector<2x32xi1>, vector<2x32xf32>
    %cst_26 = arith.constant 0.000000e+00 : f32
    %129 = vector.shape_cast %115 : vector<2x1xi1> to vector<2x1xi1>
    %130 = vector.broadcast %129 : vector<2x1xi1> to vector<2x32xi1>
    %131 = vector.broadcast %cst_26 : f32 to vector<2x32xf32>
    %132 = arith.select %130, %111, %131 : vector<2x32xi1>, vector<2x32xf32>
    %cst_27 = arith.constant 0.000000e+00 : f32
    %133 = vector.shape_cast %116 : vector<2x1xi1> to vector<2x1xi1>
    %134 = vector.broadcast %133 : vector<2x1xi1> to vector<2x32xi1>
    %135 = vector.broadcast %cst_27 : f32 to vector<2x32xf32>
    %136 = arith.select %134, %114, %135 : vector<2x32xi1>, vector<2x32xf32>
    %137 = vector.extract_strided_slice %6 {offsets = [4, 0], sizes = [2, 128], strides = [1, 1]} : vector<16x128xf32> to vector<2x128xf32>
    %138 = arith.truncf %119 : vector<2x32xf32> to vector<2x32xbf16>
    %cst_28 = arith.constant dense<0.000000e+00> : vector<2x128xf32>
    %139 = tpu.matmul %138, %8, %cst_28 {dimension_numbers = #tpu.dot_dimension_numbers<[1], [0], [0], [1], [0, 0, 1, 1], [], []>} : vector<2x32xbf16>, vector<32x128xbf16>, vector<2x128xf32> -> vector<2x128xf32>
    %140 = arith.addf %137, %139 : vector<2x128xf32>
    %141 = vector.extract_strided_slice %7 {offsets = [10, 0], sizes = [2, 128], strides = [1, 1]} : vector<16x128xf32> to vector<2x128xf32>
    %142 = arith.truncf %125 : vector<2x32xf32> to vector<2x32xbf16>
    %cst_29 = arith.constant dense<0.000000e+00> : vector<2x128xf32>
    %143 = tpu.matmul %142, %9, %cst_29 {dimension_numbers = #tpu.dot_dimension_numbers<[1], [0], [0], [1], [0, 0, 1, 1], [], []>} : vector<2x32xbf16>, vector<32x128xbf16>, vector<2x128xf32> -> vector<2x128xf32>
    %144 = arith.addf %141, %143 : vector<2x128xf32>
    %145 = arith.negf %140 : vector<2x128xf32>
    %146 = math.exp %145 : vector<2x128xf32>
    %cst_30 = arith.constant 1.000000e+00 : f32
    %147 = vector.broadcast %cst_30 : f32 to vector<2x128xf32>
    %148 = arith.addf %147, %146 : vector<2x128xf32>
    %149 = arith.divf %147, %148 : vector<2x128xf32>
    %150 = math.tanh %140 : vector<2x128xf32>
    %151 = arith.negf %144 : vector<2x128xf32>
    %152 = math.exp %151 : vector<2x128xf32>
    %cst_31 = arith.constant 1.000000e+00 : f32
    %153 = vector.broadcast %cst_31 : f32 to vector<2x128xf32>
    %154 = arith.addf %153, %152 : vector<2x128xf32>
    %155 = arith.divf %153, %154 : vector<2x128xf32>
    %156 = math.tanh %144 : vector<2x128xf32>
    %157 = vector.extract_strided_slice %149 {offsets = [0, 32], sizes = [2, 32], strides = [1, 1]} : vector<2x128xf32> to vector<2x32xf32>
    %158 = arith.mulf %157, %122 : vector<2x32xf32>
    %159 = vector.extract_strided_slice %149 {offsets = [0, 0], sizes = [2, 32], strides = [1, 1]} : vector<2x128xf32> to vector<2x32xf32>
    %160 = vector.extract_strided_slice %150 {offsets = [0, 64], sizes = [2, 32], strides = [1, 1]} : vector<2x128xf32> to vector<2x32xf32>
    %161 = arith.mulf %159, %160 : vector<2x32xf32>
    %162 = arith.addf %158, %161 : vector<2x32xf32>
    %163 = vector.extract_strided_slice %155 {offsets = [0, 32], sizes = [2, 32], strides = [1, 1]} : vector<2x128xf32> to vector<2x32xf32>
    %164 = arith.mulf %163, %128 : vector<2x32xf32>
    %165 = vector.extract_strided_slice %155 {offsets = [0, 0], sizes = [2, 32], strides = [1, 1]} : vector<2x128xf32> to vector<2x32xf32>
    %166 = vector.extract_strided_slice %156 {offsets = [0, 64], sizes = [2, 32], strides = [1, 1]} : vector<2x128xf32> to vector<2x32xf32>
    %167 = arith.mulf %165, %166 : vector<2x32xf32>
    %168 = arith.addf %164, %167 : vector<2x32xf32>
    %169 = vector.extract_strided_slice %149 {offsets = [0, 96], sizes = [2, 32], strides = [1, 1]} : vector<2x128xf32> to vector<2x32xf32>
    %170 = math.tanh %162 : vector<2x32xf32>
    %171 = arith.mulf %169, %170 : vector<2x32xf32>
    %172 = vector.extract_strided_slice %155 {offsets = [0, 96], sizes = [2, 32], strides = [1, 1]} : vector<2x128xf32> to vector<2x32xf32>
    %173 = math.tanh %168 : vector<2x32xf32>
    %174 = arith.mulf %172, %173 : vector<2x32xf32>
    %175 = vector.extract_strided_slice %12 {offsets = [4, 0], sizes = [2, 1], strides = [1, 1]} : vector<16x1xi1> to vector<2x1xi1>
    %176 = vector.extract_strided_slice %12 {offsets = [10, 0], sizes = [2, 1], strides = [1, 1]} : vector<16x1xi1> to vector<2x1xi1>
    %177 = vector.shape_cast %175 : vector<2x1xi1> to vector<2x1xi1>
    %178 = vector.broadcast %177 : vector<2x1xi1> to vector<2x32xi1>
    %179 = arith.select %178, %171, %119 : vector<2x32xi1>, vector<2x32xf32>
    %180 = vector.shape_cast %175 : vector<2x1xi1> to vector<2x1xi1>
    %181 = vector.broadcast %180 : vector<2x1xi1> to vector<2x32xi1>
    %182 = arith.select %181, %162, %122 : vector<2x32xi1>, vector<2x32xf32>
    %183 = vector.shape_cast %176 : vector<2x1xi1> to vector<2x1xi1>
    %184 = vector.broadcast %183 : vector<2x1xi1> to vector<2x32xi1>
    %185 = arith.select %184, %174, %125 : vector<2x32xi1>, vector<2x32xf32>
    %186 = vector.shape_cast %176 : vector<2x1xi1> to vector<2x1xi1>
    %187 = vector.broadcast %186 : vector<2x1xi1> to vector<2x32xi1>
    %188 = arith.select %187, %168, %128 : vector<2x32xi1>, vector<2x32xf32>
    %cst_32 = arith.constant 0.000000e+00 : f32
    %189 = vector.shape_cast %175 : vector<2x1xi1> to vector<2x1xi1>
    %190 = vector.broadcast %189 : vector<2x1xi1> to vector<2x32xi1>
    %191 = vector.broadcast %cst_32 : f32 to vector<2x32xf32>
    %192 = arith.select %190, %171, %191 : vector<2x32xi1>, vector<2x32xf32>
    %cst_33 = arith.constant 0.000000e+00 : f32
    %193 = vector.shape_cast %176 : vector<2x1xi1> to vector<2x1xi1>
    %194 = vector.broadcast %193 : vector<2x1xi1> to vector<2x32xi1>
    %195 = vector.broadcast %cst_33 : f32 to vector<2x32xf32>
    %196 = arith.select %194, %174, %195 : vector<2x32xi1>, vector<2x32xf32>
    %197 = vector.extract_strided_slice %6 {offsets = [6, 0], sizes = [2, 128], strides = [1, 1]} : vector<16x128xf32> to vector<2x128xf32>
    %198 = arith.truncf %179 : vector<2x32xf32> to vector<2x32xbf16>
    %cst_34 = arith.constant dense<0.000000e+00> : vector<2x128xf32>
    %199 = tpu.matmul %198, %8, %cst_34 {dimension_numbers = #tpu.dot_dimension_numbers<[1], [0], [0], [1], [0, 0, 1, 1], [], []>} : vector<2x32xbf16>, vector<32x128xbf16>, vector<2x128xf32> -> vector<2x128xf32>
    %200 = arith.addf %197, %199 : vector<2x128xf32>
    %201 = vector.extract_strided_slice %7 {offsets = [8, 0], sizes = [2, 128], strides = [1, 1]} : vector<16x128xf32> to vector<2x128xf32>
    %202 = arith.truncf %185 : vector<2x32xf32> to vector<2x32xbf16>
    %cst_35 = arith.constant dense<0.000000e+00> : vector<2x128xf32>
    %203 = tpu.matmul %202, %9, %cst_35 {dimension_numbers = #tpu.dot_dimension_numbers<[1], [0], [0], [1], [0, 0, 1, 1], [], []>} : vector<2x32xbf16>, vector<32x128xbf16>, vector<2x128xf32> -> vector<2x128xf32>
    %204 = arith.addf %201, %203 : vector<2x128xf32>
    %205 = arith.negf %200 : vector<2x128xf32>
    %206 = math.exp %205 : vector<2x128xf32>
    %cst_36 = arith.constant 1.000000e+00 : f32
    %207 = vector.broadcast %cst_36 : f32 to vector<2x128xf32>
    %208 = arith.addf %207, %206 : vector<2x128xf32>
    %209 = arith.divf %207, %208 : vector<2x128xf32>
    %210 = math.tanh %200 : vector<2x128xf32>
    %211 = arith.negf %204 : vector<2x128xf32>
    %212 = math.exp %211 : vector<2x128xf32>
    %cst_37 = arith.constant 1.000000e+00 : f32
    %213 = vector.broadcast %cst_37 : f32 to vector<2x128xf32>
    %214 = arith.addf %213, %212 : vector<2x128xf32>
    %215 = arith.divf %213, %214 : vector<2x128xf32>
    %216 = math.tanh %204 : vector<2x128xf32>
    %217 = vector.extract_strided_slice %209 {offsets = [0, 32], sizes = [2, 32], strides = [1, 1]} : vector<2x128xf32> to vector<2x32xf32>
    %218 = arith.mulf %217, %182 : vector<2x32xf32>
    %219 = vector.extract_strided_slice %209 {offsets = [0, 0], sizes = [2, 32], strides = [1, 1]} : vector<2x128xf32> to vector<2x32xf32>
    %220 = vector.extract_strided_slice %210 {offsets = [0, 64], sizes = [2, 32], strides = [1, 1]} : vector<2x128xf32> to vector<2x32xf32>
    %221 = arith.mulf %219, %220 : vector<2x32xf32>
    %222 = arith.addf %218, %221 : vector<2x32xf32>
    %223 = vector.extract_strided_slice %215 {offsets = [0, 32], sizes = [2, 32], strides = [1, 1]} : vector<2x128xf32> to vector<2x32xf32>
    %224 = arith.mulf %223, %188 : vector<2x32xf32>
    %225 = vector.extract_strided_slice %215 {offsets = [0, 0], sizes = [2, 32], strides = [1, 1]} : vector<2x128xf32> to vector<2x32xf32>
    %226 = vector.extract_strided_slice %216 {offsets = [0, 64], sizes = [2, 32], strides = [1, 1]} : vector<2x128xf32> to vector<2x32xf32>
    %227 = arith.mulf %225, %226 : vector<2x32xf32>
    %228 = arith.addf %224, %227 : vector<2x32xf32>
    %229 = vector.extract_strided_slice %209 {offsets = [0, 96], sizes = [2, 32], strides = [1, 1]} : vector<2x128xf32> to vector<2x32xf32>
    %230 = math.tanh %222 : vector<2x32xf32>
    %231 = arith.mulf %229, %230 : vector<2x32xf32>
    %232 = vector.extract_strided_slice %215 {offsets = [0, 96], sizes = [2, 32], strides = [1, 1]} : vector<2x128xf32> to vector<2x32xf32>
    %233 = math.tanh %228 : vector<2x32xf32>
    %234 = arith.mulf %232, %233 : vector<2x32xf32>
    %235 = vector.extract_strided_slice %12 {offsets = [6, 0], sizes = [2, 1], strides = [1, 1]} : vector<16x1xi1> to vector<2x1xi1>
    %236 = vector.extract_strided_slice %12 {offsets = [8, 0], sizes = [2, 1], strides = [1, 1]} : vector<16x1xi1> to vector<2x1xi1>
    %237 = vector.shape_cast %235 : vector<2x1xi1> to vector<2x1xi1>
    %238 = vector.broadcast %237 : vector<2x1xi1> to vector<2x32xi1>
    %239 = arith.select %238, %231, %179 : vector<2x32xi1>, vector<2x32xf32>
    %240 = vector.shape_cast %235 : vector<2x1xi1> to vector<2x1xi1>
    %241 = vector.broadcast %240 : vector<2x1xi1> to vector<2x32xi1>
    %242 = arith.select %241, %222, %182 : vector<2x32xi1>, vector<2x32xf32>
    %243 = vector.shape_cast %236 : vector<2x1xi1> to vector<2x1xi1>
    %244 = vector.broadcast %243 : vector<2x1xi1> to vector<2x32xi1>
    %245 = arith.select %244, %234, %185 : vector<2x32xi1>, vector<2x32xf32>
    %246 = vector.shape_cast %236 : vector<2x1xi1> to vector<2x1xi1>
    %247 = vector.broadcast %246 : vector<2x1xi1> to vector<2x32xi1>
    %248 = arith.select %247, %228, %188 : vector<2x32xi1>, vector<2x32xf32>
    %cst_38 = arith.constant 0.000000e+00 : f32
    %249 = vector.shape_cast %235 : vector<2x1xi1> to vector<2x1xi1>
    %250 = vector.broadcast %249 : vector<2x1xi1> to vector<2x32xi1>
    %251 = vector.broadcast %cst_38 : f32 to vector<2x32xf32>
    %252 = arith.select %250, %231, %251 : vector<2x32xi1>, vector<2x32xf32>
    %cst_39 = arith.constant 0.000000e+00 : f32
    %253 = vector.shape_cast %236 : vector<2x1xi1> to vector<2x1xi1>
    %254 = vector.broadcast %253 : vector<2x1xi1> to vector<2x32xi1>
    %255 = vector.broadcast %cst_39 : f32 to vector<2x32xf32>
    %256 = arith.select %254, %234, %255 : vector<2x32xi1>, vector<2x32xf32>
    %257 = vector.extract_strided_slice %6 {offsets = [8, 0], sizes = [2, 128], strides = [1, 1]} : vector<16x128xf32> to vector<2x128xf32>
    %258 = arith.truncf %239 : vector<2x32xf32> to vector<2x32xbf16>
    %cst_40 = arith.constant dense<0.000000e+00> : vector<2x128xf32>
    %259 = tpu.matmul %258, %8, %cst_40 {dimension_numbers = #tpu.dot_dimension_numbers<[1], [0], [0], [1], [0, 0, 1, 1], [], []>} : vector<2x32xbf16>, vector<32x128xbf16>, vector<2x128xf32> -> vector<2x128xf32>
    %260 = arith.addf %257, %259 : vector<2x128xf32>
    %261 = vector.extract_strided_slice %7 {offsets = [6, 0], sizes = [2, 128], strides = [1, 1]} : vector<16x128xf32> to vector<2x128xf32>
    %262 = arith.truncf %245 : vector<2x32xf32> to vector<2x32xbf16>
    %cst_41 = arith.constant dense<0.000000e+00> : vector<2x128xf32>
    %263 = tpu.matmul %262, %9, %cst_41 {dimension_numbers = #tpu.dot_dimension_numbers<[1], [0], [0], [1], [0, 0, 1, 1], [], []>} : vector<2x32xbf16>, vector<32x128xbf16>, vector<2x128xf32> -> vector<2x128xf32>
    %264 = arith.addf %261, %263 : vector<2x128xf32>
    %265 = arith.negf %260 : vector<2x128xf32>
    %266 = math.exp %265 : vector<2x128xf32>
    %cst_42 = arith.constant 1.000000e+00 : f32
    %267 = vector.broadcast %cst_42 : f32 to vector<2x128xf32>
    %268 = arith.addf %267, %266 : vector<2x128xf32>
    %269 = arith.divf %267, %268 : vector<2x128xf32>
    %270 = math.tanh %260 : vector<2x128xf32>
    %271 = arith.negf %264 : vector<2x128xf32>
    %272 = math.exp %271 : vector<2x128xf32>
    %cst_43 = arith.constant 1.000000e+00 : f32
    %273 = vector.broadcast %cst_43 : f32 to vector<2x128xf32>
    %274 = arith.addf %273, %272 : vector<2x128xf32>
    %275 = arith.divf %273, %274 : vector<2x128xf32>
    %276 = math.tanh %264 : vector<2x128xf32>
    %277 = vector.extract_strided_slice %269 {offsets = [0, 32], sizes = [2, 32], strides = [1, 1]} : vector<2x128xf32> to vector<2x32xf32>
    %278 = arith.mulf %277, %242 : vector<2x32xf32>
    %279 = vector.extract_strided_slice %269 {offsets = [0, 0], sizes = [2, 32], strides = [1, 1]} : vector<2x128xf32> to vector<2x32xf32>
    %280 = vector.extract_strided_slice %270 {offsets = [0, 64], sizes = [2, 32], strides = [1, 1]} : vector<2x128xf32> to vector<2x32xf32>
    %281 = arith.mulf %279, %280 : vector<2x32xf32>
    %282 = arith.addf %278, %281 : vector<2x32xf32>
    %283 = vector.extract_strided_slice %275 {offsets = [0, 32], sizes = [2, 32], strides = [1, 1]} : vector<2x128xf32> to vector<2x32xf32>
    %284 = arith.mulf %283, %248 : vector<2x32xf32>
    %285 = vector.extract_strided_slice %275 {offsets = [0, 0], sizes = [2, 32], strides = [1, 1]} : vector<2x128xf32> to vector<2x32xf32>
    %286 = vector.extract_strided_slice %276 {offsets = [0, 64], sizes = [2, 32], strides = [1, 1]} : vector<2x128xf32> to vector<2x32xf32>
    %287 = arith.mulf %285, %286 : vector<2x32xf32>
    %288 = arith.addf %284, %287 : vector<2x32xf32>
    %289 = vector.extract_strided_slice %269 {offsets = [0, 96], sizes = [2, 32], strides = [1, 1]} : vector<2x128xf32> to vector<2x32xf32>
    %290 = math.tanh %282 : vector<2x32xf32>
    %291 = arith.mulf %289, %290 : vector<2x32xf32>
    %292 = vector.extract_strided_slice %275 {offsets = [0, 96], sizes = [2, 32], strides = [1, 1]} : vector<2x128xf32> to vector<2x32xf32>
    %293 = math.tanh %288 : vector<2x32xf32>
    %294 = arith.mulf %292, %293 : vector<2x32xf32>
    %295 = vector.extract_strided_slice %12 {offsets = [8, 0], sizes = [2, 1], strides = [1, 1]} : vector<16x1xi1> to vector<2x1xi1>
    %296 = vector.extract_strided_slice %12 {offsets = [6, 0], sizes = [2, 1], strides = [1, 1]} : vector<16x1xi1> to vector<2x1xi1>
    %297 = vector.shape_cast %295 : vector<2x1xi1> to vector<2x1xi1>
    %298 = vector.broadcast %297 : vector<2x1xi1> to vector<2x32xi1>
    %299 = arith.select %298, %291, %239 : vector<2x32xi1>, vector<2x32xf32>
    %300 = vector.shape_cast %295 : vector<2x1xi1> to vector<2x1xi1>
    %301 = vector.broadcast %300 : vector<2x1xi1> to vector<2x32xi1>
    %302 = arith.select %301, %282, %242 : vector<2x32xi1>, vector<2x32xf32>
    %303 = vector.shape_cast %296 : vector<2x1xi1> to vector<2x1xi1>
    %304 = vector.broadcast %303 : vector<2x1xi1> to vector<2x32xi1>
    %305 = arith.select %304, %294, %245 : vector<2x32xi1>, vector<2x32xf32>
    %306 = vector.shape_cast %296 : vector<2x1xi1> to vector<2x1xi1>
    %307 = vector.broadcast %306 : vector<2x1xi1> to vector<2x32xi1>
    %308 = arith.select %307, %288, %248 : vector<2x32xi1>, vector<2x32xf32>
    %cst_44 = arith.constant 0.000000e+00 : f32
    %309 = vector.shape_cast %295 : vector<2x1xi1> to vector<2x1xi1>
    %310 = vector.broadcast %309 : vector<2x1xi1> to vector<2x32xi1>
    %311 = vector.broadcast %cst_44 : f32 to vector<2x32xf32>
    %312 = arith.select %310, %291, %311 : vector<2x32xi1>, vector<2x32xf32>
    %cst_45 = arith.constant 0.000000e+00 : f32
    %313 = vector.shape_cast %296 : vector<2x1xi1> to vector<2x1xi1>
    %314 = vector.broadcast %313 : vector<2x1xi1> to vector<2x32xi1>
    %315 = vector.broadcast %cst_45 : f32 to vector<2x32xf32>
    %316 = arith.select %314, %294, %315 : vector<2x32xi1>, vector<2x32xf32>
    %317 = vector.extract_strided_slice %6 {offsets = [10, 0], sizes = [2, 128], strides = [1, 1]} : vector<16x128xf32> to vector<2x128xf32>
    %318 = arith.truncf %299 : vector<2x32xf32> to vector<2x32xbf16>
    %cst_46 = arith.constant dense<0.000000e+00> : vector<2x128xf32>
    %319 = tpu.matmul %318, %8, %cst_46 {dimension_numbers = #tpu.dot_dimension_numbers<[1], [0], [0], [1], [0, 0, 1, 1], [], []>} : vector<2x32xbf16>, vector<32x128xbf16>, vector<2x128xf32> -> vector<2x128xf32>
    %320 = arith.addf %317, %319 : vector<2x128xf32>
    %321 = vector.extract_strided_slice %7 {offsets = [4, 0], sizes = [2, 128], strides = [1, 1]} : vector<16x128xf32> to vector<2x128xf32>
    %322 = arith.truncf %305 : vector<2x32xf32> to vector<2x32xbf16>
    %cst_47 = arith.constant dense<0.000000e+00> : vector<2x128xf32>
    %323 = tpu.matmul %322, %9, %cst_47 {dimension_numbers = #tpu.dot_dimension_numbers<[1], [0], [0], [1], [0, 0, 1, 1], [], []>} : vector<2x32xbf16>, vector<32x128xbf16>, vector<2x128xf32> -> vector<2x128xf32>
    %324 = arith.addf %321, %323 : vector<2x128xf32>
    %325 = arith.negf %320 : vector<2x128xf32>
    %326 = math.exp %325 : vector<2x128xf32>
    %cst_48 = arith.constant 1.000000e+00 : f32
    %327 = vector.broadcast %cst_48 : f32 to vector<2x128xf32>
    %328 = arith.addf %327, %326 : vector<2x128xf32>
    %329 = arith.divf %327, %328 : vector<2x128xf32>
    %330 = math.tanh %320 : vector<2x128xf32>
    %331 = arith.negf %324 : vector<2x128xf32>
    %332 = math.exp %331 : vector<2x128xf32>
    %cst_49 = arith.constant 1.000000e+00 : f32
    %333 = vector.broadcast %cst_49 : f32 to vector<2x128xf32>
    %334 = arith.addf %333, %332 : vector<2x128xf32>
    %335 = arith.divf %333, %334 : vector<2x128xf32>
    %336 = math.tanh %324 : vector<2x128xf32>
    %337 = vector.extract_strided_slice %329 {offsets = [0, 32], sizes = [2, 32], strides = [1, 1]} : vector<2x128xf32> to vector<2x32xf32>
    %338 = arith.mulf %337, %302 : vector<2x32xf32>
    %339 = vector.extract_strided_slice %329 {offsets = [0, 0], sizes = [2, 32], strides = [1, 1]} : vector<2x128xf32> to vector<2x32xf32>
    %340 = vector.extract_strided_slice %330 {offsets = [0, 64], sizes = [2, 32], strides = [1, 1]} : vector<2x128xf32> to vector<2x32xf32>
    %341 = arith.mulf %339, %340 : vector<2x32xf32>
    %342 = arith.addf %338, %341 : vector<2x32xf32>
    %343 = vector.extract_strided_slice %335 {offsets = [0, 32], sizes = [2, 32], strides = [1, 1]} : vector<2x128xf32> to vector<2x32xf32>
    %344 = arith.mulf %343, %308 : vector<2x32xf32>
    %345 = vector.extract_strided_slice %335 {offsets = [0, 0], sizes = [2, 32], strides = [1, 1]} : vector<2x128xf32> to vector<2x32xf32>
    %346 = vector.extract_strided_slice %336 {offsets = [0, 64], sizes = [2, 32], strides = [1, 1]} : vector<2x128xf32> to vector<2x32xf32>
    %347 = arith.mulf %345, %346 : vector<2x32xf32>
    %348 = arith.addf %344, %347 : vector<2x32xf32>
    %349 = vector.extract_strided_slice %329 {offsets = [0, 96], sizes = [2, 32], strides = [1, 1]} : vector<2x128xf32> to vector<2x32xf32>
    %350 = math.tanh %342 : vector<2x32xf32>
    %351 = arith.mulf %349, %350 : vector<2x32xf32>
    %352 = vector.extract_strided_slice %335 {offsets = [0, 96], sizes = [2, 32], strides = [1, 1]} : vector<2x128xf32> to vector<2x32xf32>
    %353 = math.tanh %348 : vector<2x32xf32>
    %354 = arith.mulf %352, %353 : vector<2x32xf32>
    %355 = vector.extract_strided_slice %12 {offsets = [10, 0], sizes = [2, 1], strides = [1, 1]} : vector<16x1xi1> to vector<2x1xi1>
    %356 = vector.extract_strided_slice %12 {offsets = [4, 0], sizes = [2, 1], strides = [1, 1]} : vector<16x1xi1> to vector<2x1xi1>
    %357 = vector.shape_cast %355 : vector<2x1xi1> to vector<2x1xi1>
    %358 = vector.broadcast %357 : vector<2x1xi1> to vector<2x32xi1>
    %359 = arith.select %358, %351, %299 : vector<2x32xi1>, vector<2x32xf32>
    %360 = vector.shape_cast %355 : vector<2x1xi1> to vector<2x1xi1>
    %361 = vector.broadcast %360 : vector<2x1xi1> to vector<2x32xi1>
    %362 = arith.select %361, %342, %302 : vector<2x32xi1>, vector<2x32xf32>
    %363 = vector.shape_cast %356 : vector<2x1xi1> to vector<2x1xi1>
    %364 = vector.broadcast %363 : vector<2x1xi1> to vector<2x32xi1>
    %365 = arith.select %364, %354, %305 : vector<2x32xi1>, vector<2x32xf32>
    %366 = vector.shape_cast %356 : vector<2x1xi1> to vector<2x1xi1>
    %367 = vector.broadcast %366 : vector<2x1xi1> to vector<2x32xi1>
    %368 = arith.select %367, %348, %308 : vector<2x32xi1>, vector<2x32xf32>
    %cst_50 = arith.constant 0.000000e+00 : f32
    %369 = vector.shape_cast %355 : vector<2x1xi1> to vector<2x1xi1>
    %370 = vector.broadcast %369 : vector<2x1xi1> to vector<2x32xi1>
    %371 = vector.broadcast %cst_50 : f32 to vector<2x32xf32>
    %372 = arith.select %370, %351, %371 : vector<2x32xi1>, vector<2x32xf32>
    %cst_51 = arith.constant 0.000000e+00 : f32
    %373 = vector.shape_cast %356 : vector<2x1xi1> to vector<2x1xi1>
    %374 = vector.broadcast %373 : vector<2x1xi1> to vector<2x32xi1>
    %375 = vector.broadcast %cst_51 : f32 to vector<2x32xf32>
    %376 = arith.select %374, %354, %375 : vector<2x32xi1>, vector<2x32xf32>
    %377 = vector.extract_strided_slice %6 {offsets = [12, 0], sizes = [2, 128], strides = [1, 1]} : vector<16x128xf32> to vector<2x128xf32>
    %378 = arith.truncf %359 : vector<2x32xf32> to vector<2x32xbf16>
    %cst_52 = arith.constant dense<0.000000e+00> : vector<2x128xf32>
    %379 = tpu.matmul %378, %8, %cst_52 {dimension_numbers = #tpu.dot_dimension_numbers<[1], [0], [0], [1], [0, 0, 1, 1], [], []>} : vector<2x32xbf16>, vector<32x128xbf16>, vector<2x128xf32> -> vector<2x128xf32>
    %380 = arith.addf %377, %379 : vector<2x128xf32>
    %381 = vector.extract_strided_slice %7 {offsets = [2, 0], sizes = [2, 128], strides = [1, 1]} : vector<16x128xf32> to vector<2x128xf32>
    %382 = arith.truncf %365 : vector<2x32xf32> to vector<2x32xbf16>
    %cst_53 = arith.constant dense<0.000000e+00> : vector<2x128xf32>
    %383 = tpu.matmul %382, %9, %cst_53 {dimension_numbers = #tpu.dot_dimension_numbers<[1], [0], [0], [1], [0, 0, 1, 1], [], []>} : vector<2x32xbf16>, vector<32x128xbf16>, vector<2x128xf32> -> vector<2x128xf32>
    %384 = arith.addf %381, %383 : vector<2x128xf32>
    %385 = arith.negf %380 : vector<2x128xf32>
    %386 = math.exp %385 : vector<2x128xf32>
    %cst_54 = arith.constant 1.000000e+00 : f32
    %387 = vector.broadcast %cst_54 : f32 to vector<2x128xf32>
    %388 = arith.addf %387, %386 : vector<2x128xf32>
    %389 = arith.divf %387, %388 : vector<2x128xf32>
    %390 = math.tanh %380 : vector<2x128xf32>
    %391 = arith.negf %384 : vector<2x128xf32>
    %392 = math.exp %391 : vector<2x128xf32>
    %cst_55 = arith.constant 1.000000e+00 : f32
    %393 = vector.broadcast %cst_55 : f32 to vector<2x128xf32>
    %394 = arith.addf %393, %392 : vector<2x128xf32>
    %395 = arith.divf %393, %394 : vector<2x128xf32>
    %396 = math.tanh %384 : vector<2x128xf32>
    %397 = vector.extract_strided_slice %389 {offsets = [0, 32], sizes = [2, 32], strides = [1, 1]} : vector<2x128xf32> to vector<2x32xf32>
    %398 = arith.mulf %397, %362 : vector<2x32xf32>
    %399 = vector.extract_strided_slice %389 {offsets = [0, 0], sizes = [2, 32], strides = [1, 1]} : vector<2x128xf32> to vector<2x32xf32>
    %400 = vector.extract_strided_slice %390 {offsets = [0, 64], sizes = [2, 32], strides = [1, 1]} : vector<2x128xf32> to vector<2x32xf32>
    %401 = arith.mulf %399, %400 : vector<2x32xf32>
    %402 = arith.addf %398, %401 : vector<2x32xf32>
    %403 = vector.extract_strided_slice %395 {offsets = [0, 32], sizes = [2, 32], strides = [1, 1]} : vector<2x128xf32> to vector<2x32xf32>
    %404 = arith.mulf %403, %368 : vector<2x32xf32>
    %405 = vector.extract_strided_slice %395 {offsets = [0, 0], sizes = [2, 32], strides = [1, 1]} : vector<2x128xf32> to vector<2x32xf32>
    %406 = vector.extract_strided_slice %396 {offsets = [0, 64], sizes = [2, 32], strides = [1, 1]} : vector<2x128xf32> to vector<2x32xf32>
    %407 = arith.mulf %405, %406 : vector<2x32xf32>
    %408 = arith.addf %404, %407 : vector<2x32xf32>
    %409 = vector.extract_strided_slice %389 {offsets = [0, 96], sizes = [2, 32], strides = [1, 1]} : vector<2x128xf32> to vector<2x32xf32>
    %410 = math.tanh %402 : vector<2x32xf32>
    %411 = arith.mulf %409, %410 : vector<2x32xf32>
    %412 = vector.extract_strided_slice %395 {offsets = [0, 96], sizes = [2, 32], strides = [1, 1]} : vector<2x128xf32> to vector<2x32xf32>
    %413 = math.tanh %408 : vector<2x32xf32>
    %414 = arith.mulf %412, %413 : vector<2x32xf32>
    %415 = vector.extract_strided_slice %12 {offsets = [12, 0], sizes = [2, 1], strides = [1, 1]} : vector<16x1xi1> to vector<2x1xi1>
    %416 = vector.extract_strided_slice %12 {offsets = [2, 0], sizes = [2, 1], strides = [1, 1]} : vector<16x1xi1> to vector<2x1xi1>
    %417 = vector.shape_cast %415 : vector<2x1xi1> to vector<2x1xi1>
    %418 = vector.broadcast %417 : vector<2x1xi1> to vector<2x32xi1>
    %419 = arith.select %418, %411, %359 : vector<2x32xi1>, vector<2x32xf32>
    %420 = vector.shape_cast %415 : vector<2x1xi1> to vector<2x1xi1>
    %421 = vector.broadcast %420 : vector<2x1xi1> to vector<2x32xi1>
    %422 = arith.select %421, %402, %362 : vector<2x32xi1>, vector<2x32xf32>
    %423 = vector.shape_cast %416 : vector<2x1xi1> to vector<2x1xi1>
    %424 = vector.broadcast %423 : vector<2x1xi1> to vector<2x32xi1>
    %425 = arith.select %424, %414, %365 : vector<2x32xi1>, vector<2x32xf32>
    %426 = vector.shape_cast %416 : vector<2x1xi1> to vector<2x1xi1>
    %427 = vector.broadcast %426 : vector<2x1xi1> to vector<2x32xi1>
    %428 = arith.select %427, %408, %368 : vector<2x32xi1>, vector<2x32xf32>
    %cst_56 = arith.constant 0.000000e+00 : f32
    %429 = vector.shape_cast %415 : vector<2x1xi1> to vector<2x1xi1>
    %430 = vector.broadcast %429 : vector<2x1xi1> to vector<2x32xi1>
    %431 = vector.broadcast %cst_56 : f32 to vector<2x32xf32>
    %432 = arith.select %430, %411, %431 : vector<2x32xi1>, vector<2x32xf32>
    %cst_57 = arith.constant 0.000000e+00 : f32
    %433 = vector.shape_cast %416 : vector<2x1xi1> to vector<2x1xi1>
    %434 = vector.broadcast %433 : vector<2x1xi1> to vector<2x32xi1>
    %435 = vector.broadcast %cst_57 : f32 to vector<2x32xf32>
    %436 = arith.select %434, %414, %435 : vector<2x32xi1>, vector<2x32xf32>
    %437 = vector.extract_strided_slice %6 {offsets = [14, 0], sizes = [2, 128], strides = [1, 1]} : vector<16x128xf32> to vector<2x128xf32>
    %438 = arith.truncf %419 : vector<2x32xf32> to vector<2x32xbf16>
    %cst_58 = arith.constant dense<0.000000e+00> : vector<2x128xf32>
    %439 = tpu.matmul %438, %8, %cst_58 {dimension_numbers = #tpu.dot_dimension_numbers<[1], [0], [0], [1], [0, 0, 1, 1], [], []>} : vector<2x32xbf16>, vector<32x128xbf16>, vector<2x128xf32> -> vector<2x128xf32>
    %440 = arith.addf %437, %439 : vector<2x128xf32>
    %441 = vector.extract_strided_slice %7 {offsets = [0, 0], sizes = [2, 128], strides = [1, 1]} : vector<16x128xf32> to vector<2x128xf32>
    %442 = arith.truncf %425 : vector<2x32xf32> to vector<2x32xbf16>
    %cst_59 = arith.constant dense<0.000000e+00> : vector<2x128xf32>
    %443 = tpu.matmul %442, %9, %cst_59 {dimension_numbers = #tpu.dot_dimension_numbers<[1], [0], [0], [1], [0, 0, 1, 1], [], []>} : vector<2x32xbf16>, vector<32x128xbf16>, vector<2x128xf32> -> vector<2x128xf32>
    %444 = arith.addf %441, %443 : vector<2x128xf32>
    %445 = arith.negf %440 : vector<2x128xf32>
    %446 = math.exp %445 : vector<2x128xf32>
    %cst_60 = arith.constant 1.000000e+00 : f32
    %447 = vector.broadcast %cst_60 : f32 to vector<2x128xf32>
    %448 = arith.addf %447, %446 : vector<2x128xf32>
    %449 = arith.divf %447, %448 : vector<2x128xf32>
    %450 = math.tanh %440 : vector<2x128xf32>
    %451 = arith.negf %444 : vector<2x128xf32>
    %452 = math.exp %451 : vector<2x128xf32>
    %cst_61 = arith.constant 1.000000e+00 : f32
    %453 = vector.broadcast %cst_61 : f32 to vector<2x128xf32>
    %454 = arith.addf %453, %452 : vector<2x128xf32>
    %455 = arith.divf %453, %454 : vector<2x128xf32>
    %456 = math.tanh %444 : vector<2x128xf32>
    %457 = vector.extract_strided_slice %449 {offsets = [0, 32], sizes = [2, 32], strides = [1, 1]} : vector<2x128xf32> to vector<2x32xf32>
    %458 = arith.mulf %457, %422 : vector<2x32xf32>
    %459 = vector.extract_strided_slice %449 {offsets = [0, 0], sizes = [2, 32], strides = [1, 1]} : vector<2x128xf32> to vector<2x32xf32>
    %460 = vector.extract_strided_slice %450 {offsets = [0, 64], sizes = [2, 32], strides = [1, 1]} : vector<2x128xf32> to vector<2x32xf32>
    %461 = arith.mulf %459, %460 : vector<2x32xf32>
    %462 = arith.addf %458, %461 : vector<2x32xf32>
    %463 = vector.extract_strided_slice %455 {offsets = [0, 32], sizes = [2, 32], strides = [1, 1]} : vector<2x128xf32> to vector<2x32xf32>
    %464 = arith.mulf %463, %428 : vector<2x32xf32>
    %465 = vector.extract_strided_slice %455 {offsets = [0, 0], sizes = [2, 32], strides = [1, 1]} : vector<2x128xf32> to vector<2x32xf32>
    %466 = vector.extract_strided_slice %456 {offsets = [0, 64], sizes = [2, 32], strides = [1, 1]} : vector<2x128xf32> to vector<2x32xf32>
    %467 = arith.mulf %465, %466 : vector<2x32xf32>
    %468 = arith.addf %464, %467 : vector<2x32xf32>
    %469 = vector.extract_strided_slice %449 {offsets = [0, 96], sizes = [2, 32], strides = [1, 1]} : vector<2x128xf32> to vector<2x32xf32>
    %470 = math.tanh %462 : vector<2x32xf32>
    %471 = arith.mulf %469, %470 : vector<2x32xf32>
    %472 = vector.extract_strided_slice %455 {offsets = [0, 96], sizes = [2, 32], strides = [1, 1]} : vector<2x128xf32> to vector<2x32xf32>
    %473 = math.tanh %468 : vector<2x32xf32>
    %474 = arith.mulf %472, %473 : vector<2x32xf32>
    %475 = vector.extract_strided_slice %12 {offsets = [14, 0], sizes = [2, 1], strides = [1, 1]} : vector<16x1xi1> to vector<2x1xi1>
    %476 = vector.extract_strided_slice %12 {offsets = [0, 0], sizes = [2, 1], strides = [1, 1]} : vector<16x1xi1> to vector<2x1xi1>
    %cst_62 = arith.constant 0.000000e+00 : f32
    %477 = vector.shape_cast %475 : vector<2x1xi1> to vector<2x1xi1>
    %478 = vector.broadcast %477 : vector<2x1xi1> to vector<2x32xi1>
    %479 = vector.broadcast %cst_62 : f32 to vector<2x32xf32>
    %480 = arith.select %478, %471, %479 : vector<2x32xi1>, vector<2x32xf32>
    %cst_63 = arith.constant 0.000000e+00 : f32
    %481 = vector.shape_cast %476 : vector<2x1xi1> to vector<2x1xi1>
    %482 = vector.broadcast %481 : vector<2x1xi1> to vector<2x32xi1>
    %483 = vector.broadcast %cst_63 : f32 to vector<2x32xf32>
    %484 = arith.select %482, %474, %483 : vector<2x32xi1>, vector<2x32xf32>
    %485 = tpu.concatenate %72, %484 in 1 : vector<2x32xf32>, vector<2x32xf32> -> vector<2x64xf32>
    %486 = tpu.concatenate %132, %436 in 1 : vector<2x32xf32>, vector<2x32xf32> -> vector<2x64xf32>
    %487 = tpu.concatenate %192, %376 in 1 : vector<2x32xf32>, vector<2x32xf32> -> vector<2x64xf32>
    %488 = tpu.concatenate %252, %316 in 1 : vector<2x32xf32>, vector<2x32xf32> -> vector<2x64xf32>
    %489 = tpu.concatenate %312, %256 in 1 : vector<2x32xf32>, vector<2x32xf32> -> vector<2x64xf32>
    %490 = tpu.concatenate %372, %196 in 1 : vector<2x32xf32>, vector<2x32xf32> -> vector<2x64xf32>
    %491 = tpu.concatenate %432, %136 in 1 : vector<2x32xf32>, vector<2x32xf32> -> vector<2x64xf32>
    %492 = tpu.concatenate %480, %76 in 1 : vector<2x32xf32>, vector<2x32xf32> -> vector<2x64xf32>
    %493 = tpu.concatenate %485, %486, %487, %488, %489, %490, %491, %492 in 0 : vector<2x64xf32>, vector<2x64xf32>, vector<2x64xf32>, vector<2x64xf32>, vector<2x64xf32>, vector<2x64xf32>, vector<2x64xf32>, vector<2x64xf32> -> vector<16x64xf32>
    %494 = arith.truncf %493 : vector<16x64xf32> to vector<16x64xbf16>
    %c0_64 = arith.constant 0 : index
    %c0_65 = arith.constant 0 : index
    %495 = vector.load %arg6[%c0_64, %c0_65] : memref<64x5xbf16, #tpu.memory_space<vmem>>, vector<64x5xbf16>
    %cst_66 = arith.constant dense<0.000000e+00> : vector<16x5xf32>
    %496 = tpu.matmul %494, %495, %cst_66 {dimension_numbers = #tpu.dot_dimension_numbers<[1], [0], [0], [1], [0, 0, 1, 1], [], []>} : vector<16x64xbf16>, vector<64x5xbf16>, vector<16x5xf32> -> vector<16x5xf32>
    %c0_67 = arith.constant 0 : index
    %c0_68 = arith.constant 0 : index
    %497 = vector.load %arg7[%c0_67, %c0_68] : memref<1x5xf32, #tpu.memory_space<vmem>>, vector<1x5xf32>
    %498 = vector.broadcast %497 : vector<1x5xf32> to vector<16x5xf32>
    %499 = arith.addf %496, %498 : vector<16x5xf32>
    %c0_69 = arith.constant 0 : index
    %c0_70 = arith.constant 0 : index
    %500 = vector.load %arg8[%c0_69, %c0_70] : memref<16x5xf32, #tpu.memory_space<vmem>>, vector<16x5xf32>
    tpu.vector_store %arg8[%c0_69, %c0_70], %499 {strides = array<i32>} : memref<16x5xf32, #tpu.memory_space<vmem>>, vector<16x5xf32>,
    return
  }
}

</mosaic_0001>

<llo_original>
// kernel: tpu_custom_call.1
$region0: #{tpu_custom_call.1}
  #allocation0 [shape = 'u32[]', space=smem, size = 0x4, offset = 0x4, fixed_abs, tag = 'smem constant byte address 0x4 - core index']
  #allocation1 [shape = 'u32[144,128]{1,0:T(1,128)}', space=vmem, size = 0x12000, scoped, tag = 'internal scratch']
  %s0 = inlined_call_operand.vmem [shape: bf16[16,300], index: 0, kind: input, shape index: {}]
  %s1 = inlined_call_operand.vmem [shape: f32[16,1], index: 1, kind: input, shape index: {}]
  %s2 = inlined_call_operand.hbm [shape: bf16[300,256], index: 2, kind: input, shape index: {}]
  %s3 = inlined_call_operand.vmem [shape: bf16[32,128], index: 3, kind: input, shape index: {}]
  %s4 = inlined_call_operand.vmem [shape: bf16[32,128], index: 4, kind: input, shape index: {}]
  %s5 = inlined_call_operand.vmem [shape: f32[1,256], index: 5, kind: input, shape index: {}]
  %s6 = inlined_call_operand.vmem [shape: bf16[64,5], index: 6, kind: input, shape index: {}]
  %s7 = inlined_call_operand.vmem [shape: f32[1,5], index: 7, kind: input, shape index: {}]
  %s8 = inlined_call_operand.vmem [shape: f32[16,5], index: 8, kind: output, shape index: {}]
  %s9 = sld [smem:[#allocation0]]
  $region46: #{tpu_custom_call.1} parent=0
    _
  %s11 = ssub.s32 1, %s9
  %s12 = scalar_select 0, %s11, %s9
  $region1: #{tpu_custom_call.1} parent=0
    #allocation2 [shape = 'u8[155648]{0}', space=vmem, size = 0x26000, scoped, tag = 'input window, operand 2, single buffered']
    #allocation3 [shape = 's32[1]{0}', space=sflag, size = 0x4, scoped, tag = 'scoped memory for tpu_custom_call.1']
    %13 = vsyncpa [#allocation3], 0
    // Predicated region
    $region2: #{tpu_custom_call.1} parent=1 // pred_check
      _
    $region3: #{tpu_custom_call.1} parent=1 // pred_check_branch
      %15 = sbr.rel (0) target = $region5
    $region4: #{tpu_custom_call.1} parent=1 // pred_region
      _
    $region5: #{tpu_custom_call.1} parent=1 // pred_fallthru
      _
    // Predicated region
    $region6: #{tpu_custom_call.1} parent=1 // pred_check
      _
    $region7: #{tpu_custom_call.1} parent=1 // pred_check_branch
      %17 = sbr.rel (0) target = $region9
    $region8: #{tpu_custom_call.1} parent=1 // pred_region
      _
    $region9: #{tpu_custom_call.1} parent=1 // pred_fallthru
      _
    // Predicated region
    $region10: #{tpu_custom_call.1} parent=1 // pred_check
      _
    $region11: #{tpu_custom_call.1} parent=1 // pred_check_branch
      %19 = sbr.rel (0) target = $region13
    $region12: #{tpu_custom_call.1} parent=1 // pred_region
      %s21 = ssub.s32 4864, 4864
      %22 = vsyncadd [#allocation3], %s21
      %s23 = sshll.u32 [#allocation2], 4
      %s24 = int_to_ptr.vmem [resolvable:$true] %s23
      %29 = dma.hbm_to_vmem [thread:$0]  %s2, 4864, %s24, [#allocation3], 128, 128, 8
    $region13: #{tpu_custom_call.1} parent=1 // pred_fallthru
      _
    // Predicated region
    $region14: #{tpu_custom_call.1} parent=1 // pred_check
      _
    $region15: #{tpu_custom_call.1} parent=1 // pred_check_branch
      %31 = sbr.rel (0) target = $region17
    $region16: #{tpu_custom_call.1} parent=1 // pred_region
      _
    $region17: #{tpu_custom_call.1} parent=1 // pred_fallthru
      _
    // Predicated region
    $region18: #{tpu_custom_call.1} parent=1 // pred_check
      _
    $region19: #{tpu_custom_call.1} parent=1 // pred_check_branch
      %33 = sbr.rel (0) target = $region21
    $region20: #{tpu_custom_call.1} parent=1 // pred_region
      _
    $region21: #{tpu_custom_call.1} parent=1 // pred_fallthru
      _
    // Predicated region
    $region22: #{tpu_custom_call.1} parent=1 // pred_check
      _
    $region23: #{tpu_custom_call.1} parent=1 // pred_check_branch
      %35 = sbr.rel (0) target = $region25
    $region24: #{tpu_custom_call.1} parent=1 // pred_region
      _
    $region25: #{tpu_custom_call.1} parent=1 // pred_fallthru
      _
    // Predicated region
    $region26: #{tpu_custom_call.1} parent=1 // pred_check
      _
    $region27: #{tpu_custom_call.1} parent=1 // pred_check_branch
      %37 = sbr.rel (0) target = $region29
    $region28: #{tpu_custom_call.1} parent=1 // pred_region
      _
    $region29: #{tpu_custom_call.1} parent=1 // pred_fallthru
      _
    // Predicated region
    $region30: #{tpu_custom_call.1} parent=1 // pred_check
      _
    $region31: #{tpu_custom_call.1} parent=1 // pred_check_branch
      %39 = sbr.rel (0) target = $region33
    $region32: #{tpu_custom_call.1} parent=1 // pred_region
      _
    $region33: #{tpu_custom_call.1} parent=1 // pred_fallthru
      _
    // Predicated region
    $region34: #{tpu_custom_call.1} parent=1 // pred_check
      _
    $region35: #{tpu_custom_call.1} parent=1 // pred_check_branch
      %41 = sbr.rel (0) target = $region37
    $region36: #{tpu_custom_call.1} parent=1 // pred_region
      %42 = dma.done [#allocation3], 4864
    $region37: #{tpu_custom_call.1} parent=1 // pred_fallthru
      _
    %v44 = vld [vmem:[%s0] sm:$0xff]
    %v45 = vld [vmem:[%s0 + $0x8] sm:$0xf]
    %v46 = vld [vmem:[%s0 + $0xc] sm:$0xff]
    %v47 = vld [vmem:[%s0 + $0x14] sm:$0xf]
    %v48 = vld [vmem:[#allocation2] sm:$0xff]
    %v49 = vld [vmem:[#allocation2 + $0x8] sm:$0xff]
    %v50 = vld [vmem:[#allocation2 + $0x10] sm:$0xff]
    %v51 = vld [vmem:[#allocation2 + $0x18] sm:$0xff]
    %v52 = vld [vmem:[#allocation2 + $0x20] sm:$0xff]
    %v53 = vld [vmem:[#allocation2 + $0x28] sm:$0xff]
    %v54 = vld [vmem:[#allocation2 + $0x30] sm:$0xff]
    %v55 = vld [vmem:[#allocation2 + $0x38] sm:$0xff]
    %v56 = vld [vmem:[#allocation2 + $0x40] sm:$0xff]
    %v57 = vld [vmem:[#allocation2 + $0x48] sm:$0xff]
    %v58 = vld [vmem:[#allocation2 + $0x50] sm:$0xff]
    %v59 = vld [vmem:[#allocation2 + $0x58] sm:$0xff]
    %v60 = vld [vmem:[#allocation2 + $0x60] sm:$0xff]
    %v61 = vld [vmem:[#allocation2 + $0x68] sm:$0xff]
    %v62 = vld [vmem:[#allocation2 + $0x70] sm:$0xff]
    %v63 = vld [vmem:[#allocation2 + $0x78] sm:$0xff]
    %v64 = vld [vmem:[#allocation2 + $0x80] sm:$0xff]
    %v65 = vld [vmem:[#allocation2 + $0x88] sm:$0xff]
    %v66 = vld [vmem:[#allocation2 + $0x90] sm:$0xff]
    %v67 = vld [vmem:[#allocation2 + $0x98] sm:$0xff]
    %v68 = vld [vmem:[#allocation2 + $0xa0] sm:$0xff]
    %v69 = vld [vmem:[#allocation2 + $0xa8] sm:$0xff]
    %v70 = vld [vmem:[#allocation2 + $0xb0] sm:$0xff]
    %v71 = vld [vmem:[#allocation2 + $0xb8] sm:$0xff]
    %v72 = vld [vmem:[#allocation2 + $0xc0] sm:$0xff]
    %v73 = vld [vmem:[#allocation2 + $0xc8] sm:$0xff]
    %v74 = vld [vmem:[#allocation2 + $0xd0] sm:$0xff]
    %v75 = vld [vmem:[#allocation2 + $0xd8] sm:$0xff]
    %v76 = vld [vmem:[#allocation2 + $0xe0] sm:$0xff]
    %v77 = vld [vmem:[#allocation2 + $0xe8] sm:$0xff]
    %v78 = vld [vmem:[#allocation2 + $0xf0] sm:$0xff]
    %v79 = vld [vmem:[#allocation2 + $0xf8] sm:$0xff]
    %v80 = vld [vmem:[#allocation2 + $0x100] sm:$0xff]
    %v81 = vld [vmem:[#allocation2 + $0x108] sm:$0xff]
    %v82 = vld [vmem:[#allocation2 + $0x110] sm:$0xff]
    %v83 = vld [vmem:[#allocation2 + $0x118] sm:$0xff]
    %v84 = vld [vmem:[#allocation2 + $0x120] sm:$0xff]
    %v85 = vld [vmem:[#allocation2 + $0x128] sm:$0x33]
    %v86 = vld [vmem:[%s5] sm:$0x3]
    %v88 = vlaneseq
    %v89 = vshrl.u32 %v88, 7
    %v90 = vsub.s32 0, %v89
    %v91 = vrot.slane %v86, %v90
    %v92 = vlaneseq
    %v93 = vshrl.u32 %v92, 7
    %v94 = vsub.s32 1, %v93
    %v95 = vrot.slane %v86, %v94
    %v102 = vunpack.c.l.b16 %v44
    %v103 = vunpack.c.h.b16 %v44
    %v104 = vunpack.c.l.b16 %v45
    %v105 = vunpack.c.l.b16 %v46
    %v106 = vunpack.c.h.b16 %v46
    %v107 = vunpack.c.l.b16 %v47
    %v108 = vpack.c.b16 %v105, %v102
    %v109 = vpack.c.b16 %v106, %v103
    %v110 = vpack.c.b16 %v107, %v104
    %v151 = vunpack.c.l.b16 %v48
    %v152 = vunpack.c.h.b16 %v48
    %v153 = vunpack.c.l.b16 %v49
    %v154 = vunpack.c.h.b16 %v49
    %v155 = vunpack.c.l.b16 %v50
    %v156 = vunpack.c.h.b16 %v50
    %v157 = vunpack.c.l.b16 %v51
    %v158 = vunpack.c.h.b16 %v51
    %v159 = vunpack.c.l.b16 %v52
    %v160 = vunpack.c.h.b16 %v52
    %v161 = vunpack.c.l.b16 %v53
    %v162 = vunpack.c.h.b16 %v53
    %v163 = vunpack.c.l.b16 %v54
    %v164 = vunpack.c.h.b16 %v54
    %v165 = vunpack.c.l.b16 %v55
    %v166 = vunpack.c.h.b16 %v55
    %v167 = vunpack.c.l.b16 %v56
    %v168 = vunpack.c.h.b16 %v56
    %v169 = vunpack.c.l.b16 %v57
    %v170 = vunpack.c.h.b16 %v57
    %v171 = vunpack.c.l.b16 %v58
    %v172 = vunpack.c.h.b16 %v58
    %v173 = vunpack.c.l.b16 %v59
    %v174 = vunpack.c.h.b16 %v59
    %v175 = vunpack.c.l.b16 %v60
    %v176 = vunpack.c.h.b16 %v60
    %v177 = vunpack.c.l.b16 %v61
    %v178 = vunpack.c.h.b16 %v61
    %v179 = vunpack.c.l.b16 %v62
    %v180 = vunpack.c.h.b16 %v62
    %v181 = vunpack.c.l.b16 %v63
    %v182 = vunpack.c.h.b16 %v63
    %v183 = vunpack.c.l.b16 %v64
    %v184 = vunpack.c.h.b16 %v64
    %v185 = vunpack.c.l.b16 %v65
    %v186 = vunpack.c.h.b16 %v65
    %v187 = vunpack.c.l.b16 %v66
    %v188 = vunpack.c.h.b16 %v66
    %v189 = vunpack.c.l.b16 %v67
    %v190 = vunpack.c.h.b16 %v67
    %v191 = vunpack.c.l.b16 %v68
    %v192 = vunpack.c.h.b16 %v68
    %v193 = vunpack.c.l.b16 %v69
    %v194 = vunpack.c.h.b16 %v69
    %v195 = vunpack.c.l.b16 %v70
    %v196 = vunpack.c.h.b16 %v70
    %v197 = vunpack.c.l.b16 %v71
    %v198 = vunpack.c.h.b16 %v71
    %v199 = vunpack.c.l.b16 %v72
    %v200 = vunpack.c.h.b16 %v72
    %v201 = vunpack.c.l.b16 %v73
    %v202 = vunpack.c.h.b16 %v73
    %v203 = vunpack.c.l.b16 %v74
    %v204 = vunpack.c.h.b16 %v74
    %v205 = vunpack.c.l.b16 %v75
    %v206 = vunpack.c.h.b16 %v75
    %v207 = vunpack.c.l.b16 %v76
    %v208 = vunpack.c.h.b16 %v76
    %v209 = vunpack.c.l.b16 %v77
    %v210 = vunpack.c.h.b16 %v77
    %v211 = vunpack.c.l.b16 %v78
    %v212 = vunpack.c.h.b16 %v78
    %v213 = vunpack.c.l.b16 %v79
    %v214 = vunpack.c.h.b16 %v79
    %v215 = vunpack.c.l.b16 %v80
    %v216 = vunpack.c.h.b16 %v80
    %v217 = vunpack.c.l.b16 %v81
    %v218 = vunpack.c.h.b16 %v81
    %v219 = vunpack.c.l.b16 %v82
    %v220 = vunpack.c.h.b16 %v82
    %v221 = vunpack.c.l.b16 %v83
    %v222 = vunpack.c.h.b16 %v83
    %v223 = vunpack.c.l.b16 %v84
    %v224 = vunpack.c.h.b16 %v84
    %v225 = vunpack.c.l.b16 %v85
    %v226 = vunpack.c.h.b16 %v85
    %v227 = vpack.c.b16 %v153, %v151
    %v228 = vpack.c.b16 %v154, %v152
    %v229 = vpack.c.b16 %v157, %v155
    %v230 = vpack.c.b16 %v158, %v156
    %v231 = vpack.c.b16 %v161, %v159
    %v232 = vpack.c.b16 %v162, %v160
    %v233 = vpack.c.b16 %v165, %v163
    %v234 = vpack.c.b16 %v166, %v164
    %v235 = vpack.c.b16 %v169, %v167
    %v236 = vpack.c.b16 %v170, %v168
    %v237 = vpack.c.b16 %v173, %v171
    %v238 = vpack.c.b16 %v174, %v172
    %v239 = vpack.c.b16 %v177, %v175
    %v240 = vpack.c.b16 %v178, %v176
    %v241 = vpack.c.b16 %v181, %v179
    %v242 = vpack.c.b16 %v182, %v180
    %v243 = vpack.c.b16 %v185, %v183
    %v244 = vpack.c.b16 %v186, %v184
    %v245 = vpack.c.b16 %v189, %v187
    %v246 = vpack.c.b16 %v190, %v188
    %v247 = vpack.c.b16 %v193, %v191
    %v248 = vpack.c.b16 %v194, %v192
    %v249 = vpack.c.b16 %v197, %v195
    %v250 = vpack.c.b16 %v198, %v196
    %v251 = vpack.c.b16 %v201, %v199
    %v252 = vpack.c.b16 %v202, %v200
    %v253 = vpack.c.b16 %v205, %v203
    %v254 = vpack.c.b16 %v206, %v204
    %v255 = vpack.c.b16 %v209, %v207
    %v256 = vpack.c.b16 %v210, %v208
    %v257 = vpack.c.b16 %v213, %v211
    %v258 = vpack.c.b16 %v214, %v212
    %v259 = vpack.c.b16 %v217, %v215
    %v260 = vpack.c.b16 %v218, %v216
    %v261 = vpack.c.b16 %v221, %v219
    %v262 = vpack.c.b16 %v222, %v220
    %v263 = vpack.c.b16 %v225, %v223
    %v264 = vpack.c.b16 %v226, %v224
    %vm301 = vcmask 359424
    %v303 = vsel %vm301, %v110, 0
    %vm305 = vcmask 1045504
    %v307 = vsel %vm305, %v263, 0
    %v310 = vsel %vm305, %v264, 0
    %312 = vmatprep.subr.bf16.mxu0 %v228
    %313 = vmatpush1.bf16.msra.mxu0 %v227
    %314 = vmatprep.subr.bf16.mxu0 %v230
    %315 = vmatpush1.bf16.msra.mxu0 %v229
    %316 = vmatprep.subr.bf16.mxu0 %v232
    %317 = vmatpush1.bf16.msra.mxu0 %v231
    %318 = vmatprep.subr.bf16.mxu0 %v234
    %319 = vmatpush1.bf16.msra.mxu0 %v233
    %320 = vmatprep.subr.bf16.mxu0 %v236
    %321 = vmatpush1.bf16.msra.mxu0 %v235
    %322 = vmatprep.subr.bf16.mxu0 %v238
    %323 = vmatpush1.bf16.msra.mxu0 %v237
    %324 = vmatprep.subr.bf16.mxu0 %v240
    %325 = vmatpush1.bf16.msra.mxu0 %v239
    %326 = vmatprep.subr.bf16.mxu0 %v242
    %327 = vmatpush1.bf16.msra.mxu0 %v241
    %328 = vmatprep.subr.bf16.mxu0 %v244
    %329 = vmatpush1.bf16.msra.mxu0 %v243
    %330 = vmatprep.subr.bf16.mxu0 %v246
    %331 = vmatpush1.bf16.msra.mxu0 %v245
    %332 = vmatprep.subr.bf16.mxu0 %v248
    %333 = vmatpush1.bf16.msra.mxu0 %v247
    %334 = vmatprep.subr.bf16.mxu0 %v250
    %335 = vmatpush1.bf16.msra.mxu0 %v249
    %336 = vmatprep.subr.bf16.mxu0 %v252
    %337 = vmatpush1.bf16.msra.mxu0 %v251
    %338 = vmatprep.subr.bf16.mxu0 %v254
    %339 = vmatpush1.bf16.msra.mxu0 %v253
    %340 = vmatprep.subr.bf16.mxu0 %v256
    %341 = vmatpush1.bf16.msra.mxu0 %v255
    %342 = vmatprep.subr.bf16.mxu0 %v258
    %343 = vmatpush1.bf16.msra.mxu0 %v257
    %344 = vmatprep.mubr.bf16.mxu0 %v109
    %345 = vmatmul.mubr.bf16.gmra.mrb[0].mxu0 %v108
    %v346 = vpop.f32.mrb[0].mxu0
    %v347 = vadd.f32 %v91, %v346
    %v348 = vpop.f32.mrb[0].mxu0
    %v349 = vadd.f32 %v95, %v348
    %v350 = vpop.f32.mrb[0].mxu0
    %v351 = vadd.f32 %v91, %v350
    %v352 = vpop.f32.mrb[0].mxu0
    %v353 = vadd.f32 %v95, %v352
    %354 = vdwg.mxu0
    %355 = vmatprep.subr.bf16.mxu0 %v260
    %356 = vmatpush1.bf16.msra.mxu0 %v259
    %357 = vmatprep.subr.bf16.mxu0 %v262
    %358 = vmatpush1.bf16.msra.mxu0 %v261
    %359 = vmatprep.subr.bf16.mxu0 %v310
    %360 = vmatpush1.bf16.msra.mxu0 %v307
    %361 = vmatprep.subr.bf16.mxu0 0
    %362 = vmatpush1.bf16.msra.mxu0 0
    %363 = vmatprep.subr.bf16.mxu0 0
    %364 = vmatpush1.bf16.msra.mxu0 0
    %365 = vmatprep.subr.bf16.mxu0 0
    %366 = vmatpush1.bf16.msra.mxu0 0
    %367 = vmatprep.subr.bf16.mxu0 0
    %368 = vmatpush1.bf16.msra.mxu0 0
    %369 = vmatprep.subr.bf16.mxu0 0
    %370 = vmatpush1.bf16.msra.mxu0 0
    %371 = vmatprep.subr.bf16.mxu0 0
    %372 = vmatpush1.bf16.msra.mxu0 0
    %373 = vmatprep.subr.bf16.mxu0 0
    %374 = vmatpush1.bf16.msra.mxu0 0
    %375 = vmatprep.subr.bf16.mxu0 0
    %376 = vmatpush1.bf16.msra.mxu0 0
    %377 = vmatprep.subr.bf16.mxu0 0
    %378 = vmatpush1.bf16.msra.mxu0 0
    %379 = vmatprep.subr.bf16.mxu0 0
    %380 = vmatpush1.bf16.msra.mxu0 0
    %381 = vmatprep.subr.bf16.mxu0 0
    %382 = vmatpush1.bf16.msra.mxu0 0
    %383 = vmatprep.subr.bf16.mxu0 0
    %384 = vmatpush1.bf16.msra.mxu0 0
    %385 = vmatprep.subr.bf16.mxu0 0
    %386 = vmatpush1.bf16.msra.mxu0 0
    %387 = vmatprep.mubr.bf16.mxu0 0
    %388 = vmatmul.mubr.bf16.gmra.mrb[0].mxu0 %v303
    %v389 = vpop.f32.mrb[0].mxu0
    %v390 = vadd.f32 %v347, %v389
    %v391 = vpop.f32.mrb[0].mxu0
    %v392 = vadd.f32 %v349, %v391
    %v393 = vpop.f32.mrb[0].mxu0
    %v394 = vadd.f32 %v351, %v393
    %v395 = vpop.f32.mrb[0].mxu0
    %v396 = vadd.f32 %v353, %v395
    %397 = vdwg.mxu0
    %v398 = vld [vmem:[%s3] sm:$0xf]
    %v399 = vld [vmem:[%s3 + $0x4] sm:$0xf]
    %v400 = vld [vmem:[%s3 + $0x8] sm:$0xf]
    %v401 = vld [vmem:[%s3 + $0xc] sm:$0xf]
    %v402 = vld [vmem:[%s4] sm:$0xf]
    %v403 = vld [vmem:[%s4 + $0x4] sm:$0xf]
    %v404 = vld [vmem:[%s4 + $0x8] sm:$0xf]
    %v405 = vld [vmem:[%s4 + $0xc] sm:$0xf]
    %v406 = vld [vmem:[%s1] sm:$0xff]
    %v407 = vld [vmem:[%s1 + $0x8] sm:$0xff]
    %vm408 = vcmp.gt.f32.partialorder %v406, 0.0
    %vm409 = vcmp.gt.f32.partialorder %v407, 0.0
    %v414 = vunpack.c.l.b16 %v398
    %v415 = vunpack.c.l.b16 %v399
    %v416 = vunpack.c.l.b16 %v400
    %v417 = vunpack.c.l.b16 %v401
    %v418 = vpack.c.b16 %v415, %v414
    %v419 = vpack.c.b16 %v417, %v416
    %vm422 = vcmask 261120
    %v424 = vsel %vm422, 0, 0
    %426 = vmatprep.subr.bf16.mxu0 0
    %427 = vmatpush1.bf16.msra.mxu0 %v418
    %428 = vmatprep.subr.bf16.mxu0 0
    %429 = vmatpush1.bf16.msra.mxu0 %v419
    %430 = vmatprep.subr.bf16.mxu0 0
    %431 = vmatpush1.bf16.msra.mxu0 0
    %432 = vmatprep.subr.bf16.mxu0 0
    %433 = vmatpush1.bf16.msra.mxu0 0
    %434 = vmatprep.subr.bf16.mxu0 0
    %435 = vmatpush1.bf16.msra.mxu0 0
    %436 = vmatprep.subr.bf16.mxu0 0
    %437 = vmatpush1.bf16.msra.mxu0 0
    %438 = vmatprep.subr.bf16.mxu0 0
    %439 = vmatpush1.bf16.msra.mxu0 0
    %440 = vmatprep.subr.bf16.mxu0 0
    %441 = vmatpush1.bf16.msra.mxu0 0
    %442 = vmatprep.subr.bf16.mxu0 0
    %443 = vmatpush1.bf16.msra.mxu0 0
    %444 = vmatprep.subr.bf16.mxu0 0
    %445 = vmatpush1.bf16.msra.mxu0 0
    %446 = vmatprep.subr.bf16.mxu0 0
    %447 = vmatpush1.bf16.msra.mxu0 0
    %448 = vmatprep.subr.bf16.mxu0 0
    %449 = vmatpush1.bf16.msra.mxu0 0
    %450 = vmatprep.subr.bf16.mxu0 0
    %451 = vmatpush1.bf16.msra.mxu0 0
    %452 = vmatprep.subr.bf16.mxu0 0
    %453 = vmatpush1.bf16.msra.mxu0 0
    %454 = vmatprep.subr.bf16.mxu0 0
    %455 = vmatpush1.bf16.msra.mxu0 0
    %456 = vmatprep.subr.bf16.mxu0 0
    %457 = vmatpush1.bf16.msra.mxu0 0
    %458 = vmatprep.mubr.bf16.mxu0 0
    %459 = vmatmul.mubr.bf16.gmra.mrb[0].mxu0 %v424
    %v460 = vpop.f32.mrb[0].mxu0
    %v461 = vadd.f32 0.0, %v460
    %v462 = vpop.f32.mrb[0].mxu0
    %v463 = vpop.f32.mrb[0].mxu0
    %v464 = vpop.f32.mrb[0].mxu0
    %465 = vdwg.mxu0
    %v466 = vadd.f32 %v390, %v461
    %v471 = vunpack.c.l.b16 %v402
    %v472 = vunpack.c.l.b16 %v403
    %v473 = vunpack.c.l.b16 %v404
    %v474 = vunpack.c.l.b16 %v405
    %v475 = vpack.c.b16 %v472, %v471
    %v476 = vpack.c.b16 %v474, %v473
    %479 = vmatprep.subr.bf16.mxu0 0
    %480 = vmatpush1.bf16.msra.mxu0 %v475
    %481 = vmatprep.subr.bf16.mxu0 0
    %482 = vmatpush1.bf16.msra.mxu0 %v476
    %483 = vmatprep.subr.bf16.mxu0 0
    %484 = vmatpush1.bf16.msra.mxu0 0
    %485 = vmatprep.subr.bf16.mxu0 0
    %486 = vmatpush1.bf16.msra.mxu0 0
    %487 = vmatprep.subr.bf16.mxu0 0
    %488 = vmatpush1.bf16.msra.mxu0 0
    %489 = vmatprep.subr.bf16.mxu0 0
    %490 = vmatpush1.bf16.msra.mxu0 0
    %491 = vmatprep.subr.bf16.mxu0 0
    %492 = vmatpush1.bf16.msra.mxu0 0
    %493 = vmatprep.subr.bf16.mxu0 0
    %494 = vmatpush1.bf16.msra.mxu0 0
    %495 = vmatprep.subr.bf16.mxu0 0
    %496 = vmatpush1.bf16.msra.mxu0 0
    %497 = vmatprep.subr.bf16.mxu0 0
    %498 = vmatpush1.bf16.msra.mxu0 0
    %499 = vmatprep.subr.bf16.mxu0 0
    %500 = vmatpush1.bf16.msra.mxu0 0
    %501 = vmatprep.subr.bf16.mxu0 0
    %502 = vmatpush1.bf16.msra.mxu0 0
    %503 = vmatprep.subr.bf16.mxu0 0
    %504 = vmatpush1.bf16.msra.mxu0 0
    %505 = vmatprep.subr.bf16.mxu0 0
    %506 = vmatpush1.bf16.msra.mxu0 0
    %507 = vmatprep.subr.bf16.mxu0 0
    %508 = vmatpush1.bf16.msra.mxu0 0
    %509 = vmatprep.subr.bf16.mxu0 0
    %510 = vmatpush1.bf16.msra.mxu0 0
    %511 = vmatprep.mubr.bf16.mxu0 0
    %512 = vmatmul.mubr.bf16.gmra.mrb[0].mxu0 %v424
    %v513 = vpop.f32.mrb[0].mxu0
    %v514 = vadd.f32 0.0, %v513
    %v515 = vpop.f32.mrb[0].mxu0
    %v516 = vpop.f32.mrb[0].mxu0
    %v517 = vpop.f32.mrb[0].mxu0
    %518 = vdwg.mxu0
    %v520 = vrot.slane %v514, 2
    %v522 = vadd.f32 %v396, %v520
    %v523 = vxor.u32 %v466, 2147483648
    %v524 = vmul.f32 %v523, 1.442695
    %v525 = vpow.pop %v524
    %v526 = vadd.f32 %v525, 1.0
    %v527 = vrcp.pop %v526
    %v528 = vmul.f32 1.0, %v527
    %v529 = vtanh.pop %v466
    %v530 = vxor.u32 %v522, 2147483648
    %v531 = vmul.f32 %v530, 1.442695
    %v532 = vpow.pop %v531
    %v533 = vadd.f32 %v532, 1.0
    %v534 = vrcp.pop %v533
    %v535 = vmul.f32 1.0, %v534
    %v536 = vtanh.pop %v522
    %v537 = vmul.f32 %v528, 0.0
    %539 = vrot.lane.b32.xlu0 %v529, 64
    %v540 = vpop.permute.xlu0 %539
    %v542 = vmul.f32 %v528, %v540
    %544 = vrot.lane.b32.xlu0 %v542, 32
    %v545 = vpop.permute.xlu0 %544
    %v547 = vadd.f32 %v537, %v545
    %v548 = vmul.f32 %v535, 0.0
    %550 = vrot.lane.b32.xlu0 %v536, 64
    %v551 = vpop.permute.xlu0 %550
    %v553 = vmul.f32 %v535, %v551
    %555 = vrot.lane.b32.xlu0 %v553, 32
    %v556 = vpop.permute.xlu0 %555
    %v558 = vadd.f32 %v548, %v556
    %v559 = vtanh.pop %v547
    %561 = vrot.lane.b32.xlu0 %v559, 64
    %v562 = vpop.permute.xlu0 %561
    %v564 = vmul.f32 %v528, %v562
    %v565 = vtanh.pop %v558
    %567 = vrot.lane.b32.xlu0 %v565, 64
    %v568 = vpop.permute.xlu0 %567
    %v570 = vmul.f32 %v535, %v568
    %v571 = vsel %vm408, 1, 0
    %572 = vset.pattern.permute.xlu0 0
    %573 = vperm.xlu0 %572, %v571
    %v574 = vpop.permute.xlu0 %573
    %vm575 = vcmp.eq.s32.totalorder %v574, 1
    %v576 = vsel %vm575, %v564, 0.0
    %v577 = vsel %vm575, %v547, 0.0
    %v578 = vsel %vm409, 1, 0
    %579 = vset.pattern.permute.xlu0 0
    %580 = vperm.xlu0 %579, %v578
    %v581 = vpop.permute.xlu0 %580
    %vm582 = vcmp.eq.s32.totalorder %v581, 1
    %v583 = vsel %vm582, %v570, 0.0
    %v584 = vsel %vm582, %v558, 0.0
    %v585 = vpack.c.bf16 %v576, %v576
    %587 = vrot.lane.b32.xlu0 %v585, 32
    %v588 = vpop.permute.xlu0 %587
    %v590 = vsel %vm422, %v588, 0
    %592 = vmatprep.subr.bf16.mxu0 0
    %593 = vmatpush1.bf16.msra.mxu0 %v418
    %594 = vmatprep.subr.bf16.mxu0 0
    %595 = vmatpush1.bf16.msra.mxu0 %v419
    %596 = vmatprep.subr.bf16.mxu0 0
    %597 = vmatpush1.bf16.msra.mxu0 0
    %598 = vmatprep.subr.bf16.mxu0 0
    %599 = vmatpush1.bf16.msra.mxu0 0
    %600 = vmatprep.subr.bf16.mxu0 0
    %601 = vmatpush1.bf16.msra.mxu0 0
    %602 = vmatprep.subr.bf16.mxu0 0
    %603 = vmatpush1.bf16.msra.mxu0 0
    %604 = vmatprep.subr.bf16.mxu0 0
    %605 = vmatpush1.bf16.msra.mxu0 0
    %606 = vmatprep.subr.bf16.mxu0 0
    %607 = vmatpush1.bf16.msra.mxu0 0
    %608 = vmatprep.subr.bf16.mxu0 0
    %609 = vmatpush1.bf16.msra.mxu0 0
    %610 = vmatprep.subr.bf16.mxu0 0
    %611 = vmatpush1.bf16.msra.mxu0 0
    %612 = vmatprep.subr.bf16.mxu0 0
    %613 = vmatpush1.bf16.msra.mxu0 0
    %614 = vmatprep.subr.bf16.mxu0 0
    %615 = vmatpush1.bf16.msra.mxu0 0
    %616 = vmatprep.subr.bf16.mxu0 0
    %617 = vmatpush1.bf16.msra.mxu0 0
    %618 = vmatprep.subr.bf16.mxu0 0
    %619 = vmatpush1.bf16.msra.mxu0 0
    %620 = vmatprep.subr.bf16.mxu0 0
    %621 = vmatpush1.bf16.msra.mxu0 0
    %622 = vmatprep.subr.bf16.mxu0 0
    %623 = vmatpush1.bf16.msra.mxu0 0
    %624 = vmatprep.mubr.bf16.mxu0 0
    %625 = vmatmul.mubr.bf16.gmra.mrb[0].mxu0 %v590
    %v626 = vpop.f32.mrb[0].mxu0
    %v627 = vadd.f32 0.0, %v626
    %v628 = vpop.f32.mrb[0].mxu0
    %v629 = vpop.f32.mrb[0].mxu0
    %v630 = vpop.f32.mrb[0].mxu0
    %631 = vdwg.mxu0
    %v633 = vrot.slane %v627, 6
    %v635 = vadd.f32 %v390, %v633
    %v636 = vpack.c.bf16 %v583, %v583
    %v638 = vrot.slane %v636, 3
    %639 = vrot.lane.b32.xlu0 %v638, 32
    %v640 = vpop.permute.xlu0 %639
    %v642 = vsel %vm422, %v640, 0
    %644 = vmatprep.subr.bf16.mxu0 0
    %645 = vmatpush1.bf16.msra.mxu0 %v475
    %646 = vmatprep.subr.bf16.mxu0 0
    %647 = vmatpush1.bf16.msra.mxu0 %v476
    %648 = vmatprep.subr.bf16.mxu0 0
    %649 = vmatpush1.bf16.msra.mxu0 0
    %650 = vmatprep.subr.bf16.mxu0 0
    %651 = vmatpush1.bf16.msra.mxu0 0
    %652 = vmatprep.subr.bf16.mxu0 0
    %653 = vmatpush1.bf16.msra.mxu0 0
    %654 = vmatprep.subr.bf16.mxu0 0
    %655 = vmatpush1.bf16.msra.mxu0 0
    %656 = vmatprep.subr.bf16.mxu0 0
    %657 = vmatpush1.bf16.msra.mxu0 0
    %658 = vmatprep.subr.bf16.mxu0 0
    %659 = vmatpush1.bf16.msra.mxu0 0
    %660 = vmatprep.subr.bf16.mxu0 0
    %661 = vmatpush1.bf16.msra.mxu0 0
    %662 = vmatprep.subr.bf16.mxu0 0
    %663 = vmatpush1.bf16.msra.mxu0 0
    %664 = vmatprep.subr.bf16.mxu0 0
    %665 = vmatpush1.bf16.msra.mxu0 0
    %666 = vmatprep.subr.bf16.mxu0 0
    %667 = vmatpush1.bf16.msra.mxu0 0
    %668 = vmatprep.subr.bf16.mxu0 0
    %669 = vmatpush1.bf16.msra.mxu0 0
    %670 = vmatprep.subr.bf16.mxu0 0
    %671 = vmatpush1.bf16.msra.mxu0 0
    %672 = vmatprep.subr.bf16.mxu0 0
    %673 = vmatpush1.bf16.msra.mxu0 0
    %674 = vmatprep.subr.bf16.mxu0 0
    %675 = vmatpush1.bf16.msra.mxu0 0
    %676 = vmatprep.mubr.bf16.mxu0 0
    %677 = vmatmul.mubr.bf16.gmra.mrb[0].mxu0 %v642
    %v678 = vpop.f32.mrb[0].mxu0
    %v679 = vadd.f32 0.0, %v678
    %v680 = vpop.f32.mrb[0].mxu0
    %v681 = vpop.f32.mrb[0].mxu0
    %v682 = vpop.f32.mrb[0].mxu0
    %683 = vdwg.mxu0
    %v685 = vrot.slane %v679, 4
    %v687 = vadd.f32 %v396, %v685
    %v688 = vxor.u32 %v635, 2147483648
    %v689 = vmul.f32 %v688, 1.442695
    %v690 = vpow.pop %v689
    %v691 = vadd.f32 %v690, 1.0
    %v692 = vrcp.pop %v691
    %v693 = vmul.f32 1.0, %v692
    %v694 = vtanh.pop %v635
    %v695 = vxor.u32 %v687, 2147483648
    %v696 = vmul.f32 %v695, 1.442695
    %v697 = vpow.pop %v696
    %v698 = vadd.f32 %v697, 1.0
    %v699 = vrcp.pop %v698
    %v700 = vmul.f32 1.0, %v699
    %v701 = vtanh.pop %v687
    %v703 = vrot.slane %v577, 6
    %v705 = vmul.f32 %v693, %v703
    %707 = vrot.lane.b32.xlu0 %v694, 64
    %v708 = vpop.permute.xlu0 %707
    %v710 = vmul.f32 %v693, %v708
    %712 = vrot.lane.b32.xlu0 %v710, 32
    %v713 = vpop.permute.xlu0 %712
    %v715 = vadd.f32 %v705, %v713
    %v717 = vrot.slane %v584, 2
    %v719 = vmul.f32 %v700, %v717
    %721 = vrot.lane.b32.xlu0 %v701, 64
    %v722 = vpop.permute.xlu0 %721
    %v724 = vmul.f32 %v700, %v722
    %726 = vrot.lane.b32.xlu0 %v724, 32
    %v727 = vpop.permute.xlu0 %726
    %v729 = vadd.f32 %v719, %v727
    %v730 = vtanh.pop %v715
    %732 = vrot.lane.b32.xlu0 %v730, 64
    %v733 = vpop.permute.xlu0 %732
    %v735 = vmul.f32 %v693, %v733
    %v736 = vtanh.pop %v729
    %738 = vrot.lane.b32.xlu0 %v736, 64
    %v739 = vpop.permute.xlu0 %738
    %v741 = vmul.f32 %v700, %v739
    %v743 = vrot.slane %v576, 6
    %v745 = vsel %vm575, %v735, %v743
    %v746 = vsel %vm575, %v715, %v703
    %v748 = vrot.slane %v583, 2
    %v750 = vsel %vm582, %v741, %v748
    %v751 = vsel %vm582, %v729, %v717
    %v752 = vsel %vm575, %v735, 0.0
    %v753 = vsel %vm582, %v741, 0.0
    %v754 = vpack.c.bf16 %v745, %v745
    %v756 = vrot.slane %v754, 1
    %757 = vrot.lane.b32.xlu0 %v756, 32
    %v758 = vpop.permute.xlu0 %757
    %v760 = vsel %vm422, %v758, 0
    %762 = vmatprep.subr.bf16.mxu0 0
    %763 = vmatpush1.bf16.msra.mxu0 %v418
    %764 = vmatprep.subr.bf16.mxu0 0
    %765 = vmatpush1.bf16.msra.mxu0 %v419
    %766 = vmatprep.subr.bf16.mxu0 0
    %767 = vmatpush1.bf16.msra.mxu0 0
    %768 = vmatprep.subr.bf16.mxu0 0
    %769 = vmatpush1.bf16.msra.mxu0 0
    %770 = vmatprep.subr.bf16.mxu0 0
    %771 = vmatpush1.bf16.msra.mxu0 0
    %772 = vmatprep.subr.bf16.mxu0 0
    %773 = vmatpush1.bf16.msra.mxu0 0
    %774 = vmatprep.subr.bf16.mxu0 0
    %775 = vmatpush1.bf16.msra.mxu0 0
    %776 = vmatprep.subr.bf16.mxu0 0
    %777 = vmatpush1.bf16.msra.mxu0 0
    %778 = vmatprep.subr.bf16.mxu0 0
    %779 = vmatpush1.bf16.msra.mxu0 0
    %780 = vmatprep.subr.bf16.mxu0 0
    %781 = vmatpush1.bf16.msra.mxu0 0
    %782 = vmatprep.subr.bf16.mxu0 0
    %783 = vmatpush1.bf16.msra.mxu0 0
    %784 = vmatprep.subr.bf16.mxu0 0
    %785 = vmatpush1.bf16.msra.mxu0 0
    %786 = vmatprep.subr.bf16.mxu0 0
    %787 = vmatpush1.bf16.msra.mxu0 0
    %788 = vmatprep.subr.bf16.mxu0 0
    %789 = vmatpush1.bf16.msra.mxu0 0
    %790 = vmatprep.subr.bf16.mxu0 0
    %791 = vmatpush1.bf16.msra.mxu0 0
    %792 = vmatprep.subr.bf16.mxu0 0
    %793 = vmatpush1.bf16.msra.mxu0 0
    %794 = vmatprep.mubr.bf16.mxu0 0
    %795 = vmatmul.mubr.bf16.gmra.mrb[0].mxu0 %v760
    %v796 = vpop.f32.mrb[0].mxu0
    %v797 = vadd.f32 0.0, %v796
    %v798 = vpop.f32.mrb[0].mxu0
    %v799 = vpop.f32.mrb[0].mxu0
    %v800 = vpop.f32.mrb[0].mxu0
    %801 = vdwg.mxu0
    %v803 = vrot.slane %v797, 4
    %v805 = vadd.f32 %v390, %v803
    %v806 = vpack.c.bf16 %v750, %v750
    %v808 = vrot.slane %v806, 2
    %809 = vrot.lane.b32.xlu0 %v808, 32
    %v810 = vpop.permute.xlu0 %809
    %v812 = vsel %vm422, %v810, 0
    %814 = vmatprep.subr.bf16.mxu0 0
    %815 = vmatpush1.bf16.msra.mxu0 %v475
    %816 = vmatprep.subr.bf16.mxu0 0
    %817 = vmatpush1.bf16.msra.mxu0 %v476
    %818 = vmatprep.subr.bf16.mxu0 0
    %819 = vmatpush1.bf16.msra.mxu0 0
    %820 = vmatprep.subr.bf16.mxu0 0
    %821 = vmatpush1.bf16.msra.mxu0 0
    %822 = vmatprep.subr.bf16.mxu0 0
    %823 = vmatpush1.bf16.msra.mxu0 0
    %824 = vmatprep.subr.bf16.mxu0 0
    %825 = vmatpush1.bf16.msra.mxu0 0
    %826 = vmatprep.subr.bf16.mxu0 0
    %827 = vmatpush1.bf16.msra.mxu0 0
    %828 = vmatprep.subr.bf16.mxu0 0
    %829 = vmatpush1.bf16.msra.mxu0 0
    %830 = vmatprep.subr.bf16.mxu0 0
    %831 = vmatpush1.bf16.msra.mxu0 0
    %832 = vmatprep.subr.bf16.mxu0 0
    %833 = vmatpush1.bf16.msra.mxu0 0
    %834 = vmatprep.subr.bf16.mxu0 0
    %835 = vmatpush1.bf16.msra.mxu0 0
    %836 = vmatprep.subr.bf16.mxu0 0
    %837 = vmatpush1.bf16.msra.mxu0 0
    %838 = vmatprep.subr.bf16.mxu0 0
    %839 = vmatpush1.bf16.msra.mxu0 0
    %840 = vmatprep.subr.bf16.mxu0 0
    %841 = vmatpush1.bf16.msra.mxu0 0
    %842 = vmatprep.subr.bf16.mxu0 0
    %843 = vmatpush1.bf16.msra.mxu0 0
    %844 = vmatprep.subr.bf16.mxu0 0
    %845 = vmatpush1.bf16.msra.mxu0 0
    %846 = vmatprep.mubr.bf16.mxu0 0
    %847 = vmatmul.mubr.bf16.gmra.mrb[0].mxu0 %v812
    %v848 = vpop.f32.mrb[0].mxu0
    %v849 = vadd.f32 0.0, %v848
    %v850 = vpop.f32.mrb[0].mxu0
    %v851 = vpop.f32.mrb[0].mxu0
    %v852 = vpop.f32.mrb[0].mxu0
    %853 = vdwg.mxu0
    %v855 = vrot.slane %v849, 6
    %v857 = vadd.f32 %v396, %v855
    %v858 = vxor.u32 %v805, 2147483648
    %v859 = vmul.f32 %v858, 1.442695
    %v860 = vpow.pop %v859
    %v861 = vadd.f32 %v860, 1.0
    %v862 = vrcp.pop %v861
    %v863 = vmul.f32 1.0, %v862
    %v864 = vtanh.pop %v805
    %v865 = vxor.u32 %v857, 2147483648
    %v866 = vmul.f32 %v865, 1.442695
    %v867 = vpow.pop %v866
    %v868 = vadd.f32 %v867, 1.0
    %v869 = vrcp.pop %v868
    %v870 = vmul.f32 1.0, %v869
    %v871 = vtanh.pop %v857
    %v873 = vrot.slane %v746, 6
    %v875 = vmul.f32 %v863, %v873
    %877 = vrot.lane.b32.xlu0 %v864, 64
    %v878 = vpop.permute.xlu0 %877
    %v880 = vmul.f32 %v863, %v878
    %882 = vrot.lane.b32.xlu0 %v880, 32
    %v883 = vpop.permute.xlu0 %882
    %v885 = vadd.f32 %v875, %v883
    %v887 = vrot.slane %v751, 2
    %v889 = vmul.f32 %v870, %v887
    %891 = vrot.lane.b32.xlu0 %v871, 64
    %v892 = vpop.permute.xlu0 %891
    %v894 = vmul.f32 %v870, %v892
    %896 = vrot.lane.b32.xlu0 %v894, 32
    %v897 = vpop.permute.xlu0 %896
    %v899 = vadd.f32 %v889, %v897
    %v900 = vtanh.pop %v885
    %902 = vrot.lane.b32.xlu0 %v900, 64
    %v903 = vpop.permute.xlu0 %902
    %v905 = vmul.f32 %v863, %v903
    %v906 = vtanh.pop %v899
    %908 = vrot.lane.b32.xlu0 %v906, 64
    %v909 = vpop.permute.xlu0 %908
    %v911 = vmul.f32 %v870, %v909
    %v913 = vrot.slane %v745, 6
    %v915 = vsel %vm575, %v905, %v913
    %v916 = vsel %vm575, %v885, %v873
    %v918 = vrot.slane %v750, 2
    %v920 = vsel %vm582, %v911, %v918
    %v921 = vsel %vm582, %v899, %v887
    %v922 = vsel %vm575, %v905, 0.0
    %v923 = vsel %vm582, %v911, 0.0
    %v924 = vpack.c.bf16 %v915, %v915
    %v926 = vrot.slane %v924, 2
    %927 = vrot.lane.b32.xlu0 %v926, 32
    %v928 = vpop.permute.xlu0 %927
    %v930 = vsel %vm422, %v928, 0
    %932 = vmatprep.subr.bf16.mxu0 0
    %933 = vmatpush1.bf16.msra.mxu0 %v418
    %934 = vmatprep.subr.bf16.mxu0 0
    %935 = vmatpush1.bf16.msra.mxu0 %v419
    %936 = vmatprep.subr.bf16.mxu0 0
    %937 = vmatpush1.bf16.msra.mxu0 0
    %938 = vmatprep.subr.bf16.mxu0 0
    %939 = vmatpush1.bf16.msra.mxu0 0
    %940 = vmatprep.subr.bf16.mxu0 0
    %941 = vmatpush1.bf16.msra.mxu0 0
    %942 = vmatprep.subr.bf16.mxu0 0
    %943 = vmatpush1.bf16.msra.mxu0 0
    %944 = vmatprep.subr.bf16.mxu0 0
    %945 = vmatpush1.bf16.msra.mxu0 0
    %946 = vmatprep.subr.bf16.mxu0 0
    %947 = vmatpush1.bf16.msra.mxu0 0
    %948 = vmatprep.subr.bf16.mxu0 0
    %949 = vmatpush1.bf16.msra.mxu0 0
    %950 = vmatprep.subr.bf16.mxu0 0
    %951 = vmatpush1.bf16.msra.mxu0 0
    %952 = vmatprep.subr.bf16.mxu0 0
    %953 = vmatpush1.bf16.msra.mxu0 0
    %954 = vmatprep.subr.bf16.mxu0 0
    %955 = vmatpush1.bf16.msra.mxu0 0
    %956 = vmatprep.subr.bf16.mxu0 0
    %957 = vmatpush1.bf16.msra.mxu0 0
    %958 = vmatprep.subr.bf16.mxu0 0
    %959 = vmatpush1.bf16.msra.mxu0 0
    %960 = vmatprep.subr.bf16.mxu0 0
    %961 = vmatpush1.bf16.msra.mxu0 0
    %962 = vmatprep.subr.bf16.mxu0 0
    %963 = vmatpush1.bf16.msra.mxu0 0
    %964 = vmatprep.mubr.bf16.mxu0 0
    %965 = vmatmul.mubr.bf16.gmra.mrb[0].mxu0 %v930
    %v966 = vpop.f32.mrb[0].mxu0
    %v967 = vadd.f32 0.0, %v966
    %v968 = vpop.f32.mrb[0].mxu0
    %v969 = vpop.f32.mrb[0].mxu0
    %v970 = vpop.f32.mrb[0].mxu0
    %971 = vdwg.mxu0
    %v973 = vrot.slane %v967, 2
    %v975 = vadd.f32 %v390, %v973
    %v976 = vpack.c.bf16 %v920, %v920
    %v978 = vrot.slane %v976, 1
    %979 = vrot.lane.b32.xlu0 %v978, 32
    %v980 = vpop.permute.xlu0 %979
    %v982 = vsel %vm422, %v980, 0
    %984 = vmatprep.subr.bf16.mxu0 0
    %985 = vmatpush1.bf16.msra.mxu0 %v475
    %986 = vmatprep.subr.bf16.mxu0 0
    %987 = vmatpush1.bf16.msra.mxu0 %v476
    %988 = vmatprep.subr.bf16.mxu0 0
    %989 = vmatpush1.bf16.msra.mxu0 0
    %990 = vmatprep.subr.bf16.mxu0 0
    %991 = vmatpush1.bf16.msra.mxu0 0
    %992 = vmatprep.subr.bf16.mxu0 0
    %993 = vmatpush1.bf16.msra.mxu0 0
    %994 = vmatprep.subr.bf16.mxu0 0
    %995 = vmatpush1.bf16.msra.mxu0 0
    %996 = vmatprep.subr.bf16.mxu0 0
    %997 = vmatpush1.bf16.msra.mxu0 0
    %998 = vmatprep.subr.bf16.mxu0 0
    %999 = vmatpush1.bf16.msra.mxu0 0
    %1000 = vmatprep.subr.bf16.mxu0 0
    %1001 = vmatpush1.bf16.msra.mxu0 0
    %1002 = vmatprep.subr.bf16.mxu0 0
    %1003 = vmatpush1.bf16.msra.mxu0 0
    %1004 = vmatprep.subr.bf16.mxu0 0
    %1005 = vmatpush1.bf16.msra.mxu0 0
    %1006 = vmatprep.subr.bf16.mxu0 0
    %1007 = vmatpush1.bf16.msra.mxu0 0
    %1008 = vmatprep.subr.bf16.mxu0 0
    %1009 = vmatpush1.bf16.msra.mxu0 0
    %1010 = vmatprep.subr.bf16.mxu0 0
    %1011 = vmatpush1.bf16.msra.mxu0 0
    %1012 = vmatprep.subr.bf16.mxu0 0
    %1013 = vmatpush1.bf16.msra.mxu0 0
    %1014 = vmatprep.subr.bf16.mxu0 0
    %1015 = vmatpush1.bf16.msra.mxu0 0
    %1016 = vmatprep.mubr.bf16.mxu0 0
    %1017 = vmatmul.mubr.bf16.gmra.mrb[0].mxu0 %v982
    %v1018 = vpop.f32.mrb[0].mxu0
    %v1019 = vadd.f32 0.0, %v1018
    %v1020 = vpop.f32.mrb[0].mxu0
    %v1021 = vpop.f32.mrb[0].mxu0
    %v1022 = vpop.f32.mrb[0].mxu0
    %1023 = vdwg.mxu0
    %v1024 = vadd.f32 %v396, %v1019
    %v1025 = vxor.u32 %v975, 2147483648
    %v1026 = vmul.f32 %v1025, 1.442695
    %v1027 = vpow.pop %v1026
    %v1028 = vadd.f32 %v1027, 1.0
    %v1029 = vrcp.pop %v1028
    %v1030 = vmul.f32 1.0, %v1029
    %v1031 = vtanh.pop %v975
    %v1032 = vxor.u32 %v1024, 2147483648
    %v1033 = vmul.f32 %v1032, 1.442695
    %v1034 = vpow.pop %v1033
    %v1035 = vadd.f32 %v1034, 1.0
    %v1036 = vrcp.pop %v1035
    %v1037 = vmul.f32 1.0, %v1036
    %v1038 = vtanh.pop %v1024
    %v1040 = vrot.slane %v916, 6
    %v1042 = vmul.f32 %v1030, %v1040
    %1044 = vrot.lane.b32.xlu0 %v1031, 64
    %v1045 = vpop.permute.xlu0 %1044
    %v1047 = vmul.f32 %v1030, %v1045
    %1049 = vrot.lane.b32.xlu0 %v1047, 32
    %v1050 = vpop.permute.xlu0 %1049
    %v1052 = vadd.f32 %v1042, %v1050
    %v1054 = vrot.slane %v921, 2
    %v1056 = vmul.f32 %v1037, %v1054
    %1058 = vrot.lane.b32.xlu0 %v1038, 64
    %v1059 = vpop.permute.xlu0 %1058
    %v1061 = vmul.f32 %v1037, %v1059
    %1063 = vrot.lane.b32.xlu0 %v1061, 32
    %v1064 = vpop.permute.xlu0 %1063
    %v1066 = vadd.f32 %v1056, %v1064
    %v1067 = vtanh.pop %v1052
    %1069 = vrot.lane.b32.xlu0 %v1067, 64
    %v1070 = vpop.permute.xlu0 %1069
    %v1072 = vmul.f32 %v1030, %v1070
    %v1073 = vtanh.pop %v1066
    %1075 = vrot.lane.b32.xlu0 %v1073, 64
    %v1076 = vpop.permute.xlu0 %1075
    %v1078 = vmul.f32 %v1037, %v1076
    %v1080 = vrot.slane %v915, 6
    %v1082 = vsel %vm575, %v1072, %v1080
    %v1083 = vsel %vm575, %v1052, %v1040
    %v1085 = vrot.slane %v920, 2
    %v1087 = vsel %vm582, %v1078, %v1085
    %v1088 = vsel %vm582, %v1066, %v1054
    %v1089 = vsel %vm575, %v1072, 0.0
    %v1090 = vsel %vm582, %v1078, 0.0
    %v1091 = vpack.c.bf16 %v1082, %v1082
    %v1093 = vrot.slane %v1091, 3
    %1094 = vrot.lane.b32.xlu0 %v1093, 32
    %v1095 = vpop.permute.xlu0 %1094
    %v1097 = vsel %vm422, %v1095, 0
    %1099 = vmatprep.subr.bf16.mxu0 0
    %1100 = vmatpush1.bf16.msra.mxu0 %v418
    %1101 = vmatprep.subr.bf16.mxu0 0
    %1102 = vmatpush1.bf16.msra.mxu0 %v419
    %1103 = vmatprep.subr.bf16.mxu0 0
    %1104 = vmatpush1.bf16.msra.mxu0 0
    %1105 = vmatprep.subr.bf16.mxu0 0
    %1106 = vmatpush1.bf16.msra.mxu0 0
    %1107 = vmatprep.subr.bf16.mxu0 0
    %1108 = vmatpush1.bf16.msra.mxu0 0
    %1109 = vmatprep.subr.bf16.mxu0 0
    %1110 = vmatpush1.bf16.msra.mxu0 0
    %1111 = vmatprep.subr.bf16.mxu0 0
    %1112 = vmatpush1.bf16.msra.mxu0 0
    %1113 = vmatprep.subr.bf16.mxu0 0
    %1114 = vmatpush1.bf16.msra.mxu0 0
    %1115 = vmatprep.subr.bf16.mxu0 0
    %1116 = vmatpush1.bf16.msra.mxu0 0
    %1117 = vmatprep.subr.bf16.mxu0 0
    %1118 = vmatpush1.bf16.msra.mxu0 0
    %1119 = vmatprep.subr.bf16.mxu0 0
    %1120 = vmatpush1.bf16.msra.mxu0 0
    %1121 = vmatprep.subr.bf16.mxu0 0
    %1122 = vmatpush1.bf16.msra.mxu0 0
    %1123 = vmatprep.subr.bf16.mxu0 0
    %1124 = vmatpush1.bf16.msra.mxu0 0
    %1125 = vmatprep.subr.bf16.mxu0 0
    %1126 = vmatpush1.bf16.msra.mxu0 0
    %1127 = vmatprep.subr.bf16.mxu0 0
    %1128 = vmatpush1.bf16.msra.mxu0 0
    %1129 = vmatprep.subr.bf16.mxu0 0
    %1130 = vmatpush1.bf16.msra.mxu0 0
    %1131 = vmatprep.mubr.bf16.mxu0 0
    %1132 = vmatmul.mubr.bf16.gmra.mrb[0].mxu0 %v1097
    %v1133 = vpop.f32.mrb[0].mxu0
    %v1134 = vadd.f32 0.0, %v1133
    %v1135 = vpop.f32.mrb[0].mxu0
    %v1136 = vpop.f32.mrb[0].mxu0
    %v1137 = vpop.f32.mrb[0].mxu0
    %1138 = vdwg.mxu0
    %v1139 = vadd.f32 %v394, %v1134
    %v1140 = vpack.c.bf16 %v1087, %v1087
    %1142 = vrot.lane.b32.xlu0 %v1140, 32
    %v1143 = vpop.permute.xlu0 %1142
    %v1145 = vsel %vm422, %v1143, 0
    %1147 = vmatprep.subr.bf16.mxu0 0
    %1148 = vmatpush1.bf16.msra.mxu0 %v475
    %1149 = vmatprep.subr.bf16.mxu0 0
    %1150 = vmatpush1.bf16.msra.mxu0 %v476
    %1151 = vmatprep.subr.bf16.mxu0 0
    %1152 = vmatpush1.bf16.msra.mxu0 0
    %1153 = vmatprep.subr.bf16.mxu0 0
    %1154 = vmatpush1.bf16.msra.mxu0 0
    %1155 = vmatprep.subr.bf16.mxu0 0
    %1156 = vmatpush1.bf16.msra.mxu0 0
    %1157 = vmatprep.subr.bf16.mxu0 0
    %1158 = vmatpush1.bf16.msra.mxu0 0
    %1159 = vmatprep.subr.bf16.mxu0 0
    %1160 = vmatpush1.bf16.msra.mxu0 0
    %1161 = vmatprep.subr.bf16.mxu0 0
    %1162 = vmatpush1.bf16.msra.mxu0 0
    %1163 = vmatprep.subr.bf16.mxu0 0
    %1164 = vmatpush1.bf16.msra.mxu0 0
    %1165 = vmatprep.subr.bf16.mxu0 0
    %1166 = vmatpush1.bf16.msra.mxu0 0
    %1167 = vmatprep.subr.bf16.mxu0 0
    %1168 = vmatpush1.bf16.msra.mxu0 0
    %1169 = vmatprep.subr.bf16.mxu0 0
    %1170 = vmatpush1.bf16.msra.mxu0 0
    %1171 = vmatprep.subr.bf16.mxu0 0
    %1172 = vmatpush1.bf16.msra.mxu0 0
    %1173 = vmatprep.subr.bf16.mxu0 0
    %1174 = vmatpush1.bf16.msra.mxu0 0
    %1175 = vmatprep.subr.bf16.mxu0 0
    %1176 = vmatpush1.bf16.msra.mxu0 0
    %1177 = vmatprep.subr.bf16.mxu0 0
    %1178 = vmatpush1.bf16.msra.mxu0 0
    %1179 = vmatprep.mubr.bf16.mxu0 0
    %1180 = vmatmul.mubr.bf16.gmra.mrb[0].mxu0 %v1145
    %v1181 = vpop.f32.mrb[0].mxu0
    %v1182 = vadd.f32 0.0, %v1181
    %v1183 = vpop.f32.mrb[0].mxu0
    %v1184 = vpop.f32.mrb[0].mxu0
    %v1185 = vpop.f32.mrb[0].mxu0
    %1186 = vdwg.mxu0
    %v1188 = vrot.slane %v1182, 2
    %v1190 = vadd.f32 %v392, %v1188
    %v1191 = vxor.u32 %v1139, 2147483648
    %v1192 = vmul.f32 %v1191, 1.442695
    %v1193 = vpow.pop %v1192
    %v1194 = vadd.f32 %v1193, 1.0
    %v1195 = vrcp.pop %v1194
    %v1196 = vmul.f32 1.0, %v1195
    %v1197 = vtanh.pop %v1139
    %v1198 = vxor.u32 %v1190, 2147483648
    %v1199 = vmul.f32 %v1198, 1.442695
    %v1200 = vpow.pop %v1199
    %v1201 = vadd.f32 %v1200, 1.0
    %v1202 = vrcp.pop %v1201
    %v1203 = vmul.f32 1.0, %v1202
    %v1204 = vtanh.pop %v1190
    %v1206 = vrot.slane %v1083, 6
    %v1208 = vmul.f32 %v1196, %v1206
    %1210 = vrot.lane.b32.xlu0 %v1197, 64
    %v1211 = vpop.permute.xlu0 %1210
    %v1213 = vmul.f32 %v1196, %v1211
    %1215 = vrot.lane.b32.xlu0 %v1213, 32
    %v1216 = vpop.permute.xlu0 %1215
    %v1218 = vadd.f32 %v1208, %v1216
    %v1220 = vrot.slane %v1088, 2
    %v1222 = vmul.f32 %v1203, %v1220
    %1224 = vrot.lane.b32.xlu0 %v1204, 64
    %v1225 = vpop.permute.xlu0 %1224
    %v1227 = vmul.f32 %v1203, %v1225
    %1229 = vrot.lane.b32.xlu0 %v1227, 32
    %v1230 = vpop.permute.xlu0 %1229
    %v1232 = vadd.f32 %v1222, %v1230
    %v1233 = vtanh.pop %v1218
    %1235 = vrot.lane.b32.xlu0 %v1233, 64
    %v1236 = vpop.permute.xlu0 %1235
    %v1238 = vmul.f32 %v1196, %v1236
    %v1239 = vtanh.pop %v1232
    %1241 = vrot.lane.b32.xlu0 %v1239, 64
    %v1242 = vpop.permute.xlu0 %1241
    %v1244 = vmul.f32 %v1203, %v1242
    %v1246 = vrot.slane %v1082, 6
    %v1248 = vsel %vm582, %v1238, %v1246
    %v1249 = vsel %vm582, %v1218, %v1206
    %v1251 = vrot.slane %v1087, 2
    %v1253 = vsel %vm575, %v1244, %v1251
    %v1254 = vsel %vm575, %v1232, %v1220
    %v1255 = vsel %vm582, %v1238, 0.0
    %v1256 = vsel %vm575, %v1244, 0.0
    %v1257 = vpack.c.bf16 %v1248, %v1248
    %1259 = vrot.lane.b32.xlu0 %v1257, 32
    %v1260 = vpop.permute.xlu0 %1259
    %v1262 = vsel %vm422, %v1260, 0
    %1264 = vmatprep.subr.bf16.mxu0 0
    %1265 = vmatpush1.bf16.msra.mxu0 %v418
    %1266 = vmatprep.subr.bf16.mxu0 0
    %1267 = vmatpush1.bf16.msra.mxu0 %v419
    %1268 = vmatprep.subr.bf16.mxu0 0
    %1269 = vmatpush1.bf16.msra.mxu0 0
    %1270 = vmatprep.subr.bf16.mxu0 0
    %1271 = vmatpush1.bf16.msra.mxu0 0
    %1272 = vmatprep.subr.bf16.mxu0 0
    %1273 = vmatpush1.bf16.msra.mxu0 0
    %1274 = vmatprep.subr.bf16.mxu0 0
    %1275 = vmatpush1.bf16.msra.mxu0 0
    %1276 = vmatprep.subr.bf16.mxu0 0
    %1277 = vmatpush1.bf16.msra.mxu0 0
    %1278 = vmatprep.subr.bf16.mxu0 0
    %1279 = vmatpush1.bf16.msra.mxu0 0
    %1280 = vmatprep.subr.bf16.mxu0 0
    %1281 = vmatpush1.bf16.msra.mxu0 0
    %1282 = vmatprep.subr.bf16.mxu0 0
    %1283 = vmatpush1.bf16.msra.mxu0 0
    %1284 = vmatprep.subr.bf16.mxu0 0
    %1285 = vmatpush1.bf16.msra.mxu0 0
    %1286 = vmatprep.subr.bf16.mxu0 0
    %1287 = vmatpush1.bf16.msra.mxu0 0
    %1288 = vmatprep.subr.bf16.mxu0 0
    %1289 = vmatpush1.bf16.msra.mxu0 0
    %1290 = vmatprep.subr.bf16.mxu0 0
    %1291 = vmatpush1.bf16.msra.mxu0 0
    %1292 = vmatprep.subr.bf16.mxu0 0
    %1293 = vmatpush1.bf16.msra.mxu0 0
    %1294 = vmatprep.subr.bf16.mxu0 0
    %1295 = vmatpush1.bf16.msra.mxu0 0
    %1296 = vmatprep.mubr.bf16.mxu0 0
    %1297 = vmatmul.mubr.bf16.gmra.mrb[0].mxu0 %v1262
    %v1298 = vpop.f32.mrb[0].mxu0
    %v1299 = vadd.f32 0.0, %v1298
    %v1300 = vpop.f32.mrb[0].mxu0
    %v1301 = vpop.f32.mrb[0].mxu0
    %v1302 = vpop.f32.mrb[0].mxu0
    %1303 = vdwg.mxu0
    %v1305 = vrot.slane %v1299, 6
    %v1307 = vadd.f32 %v394, %v1305
    %v1308 = vpack.c.bf16 %v1253, %v1253
    %v1310 = vrot.slane %v1308, 3
    %1311 = vrot.lane.b32.xlu0 %v1310, 32
    %v1312 = vpop.permute.xlu0 %1311
    %v1314 = vsel %vm422, %v1312, 0
    %1316 = vmatprep.subr.bf16.mxu0 0
    %1317 = vmatpush1.bf16.msra.mxu0 %v475
    %1318 = vmatprep.subr.bf16.mxu0 0
    %1319 = vmatpush1.bf16.msra.mxu0 %v476
    %1320 = vmatprep.subr.bf16.mxu0 0
    %1321 = vmatpush1.bf16.msra.mxu0 0
    %1322 = vmatprep.subr.bf16.mxu0 0
    %1323 = vmatpush1.bf16.msra.mxu0 0
    %1324 = vmatprep.subr.bf16.mxu0 0
    %1325 = vmatpush1.bf16.msra.mxu0 0
    %1326 = vmatprep.subr.bf16.mxu0 0
    %1327 = vmatpush1.bf16.msra.mxu0 0
    %1328 = vmatprep.subr.bf16.mxu0 0
    %1329 = vmatpush1.bf16.msra.mxu0 0
    %1330 = vmatprep.subr.bf16.mxu0 0
    %1331 = vmatpush1.bf16.msra.mxu0 0
    %1332 = vmatprep.subr.bf16.mxu0 0
    %1333 = vmatpush1.bf16.msra.mxu0 0
    %1334 = vmatprep.subr.bf16.mxu0 0
    %1335 = vmatpush1.bf16.msra.mxu0 0
    %1336 = vmatprep.subr.bf16.mxu0 0
    %1337 = vmatpush1.bf16.msra.mxu0 0
    %1338 = vmatprep.subr.bf16.mxu0 0
    %1339 = vmatpush1.bf16.msra.mxu0 0
    %1340 = vmatprep.subr.bf16.mxu0 0
    %1341 = vmatpush1.bf16.msra.mxu0 0
    %1342 = vmatprep.subr.bf16.mxu0 0
    %1343 = vmatpush1.bf16.msra.mxu0 0
    %1344 = vmatprep.subr.bf16.mxu0 0
    %1345 = vmatpush1.bf16.msra.mxu0 0
    %1346 = vmatprep.subr.bf16.mxu0 0
    %1347 = vmatpush1.bf16.msra.mxu0 0
    %1348 = vmatprep.mubr.bf16.mxu0 0
    %1349 = vmatmul.mubr.bf16.gmra.mrb[0].mxu0 %v1314
    %v1350 = vpop.f32.mrb[0].mxu0
    %v1351 = vadd.f32 0.0, %v1350
    %v1352 = vpop.f32.mrb[0].mxu0
    %v1353 = vpop.f32.mrb[0].mxu0
    %v1354 = vpop.f32.mrb[0].mxu0
    %1355 = vdwg.mxu0
    %v1357 = vrot.slane %v1351, 4
    %v1359 = vadd.f32 %v392, %v1357
    %v1360 = vxor.u32 %v1307, 2147483648
    %v1361 = vmul.f32 %v1360, 1.442695
    %v1362 = vpow.pop %v1361
    %v1363 = vadd.f32 %v1362, 1.0
    %v1364 = vrcp.pop %v1363
    %v1365 = vmul.f32 1.0, %v1364
    %v1366 = vtanh.pop %v1307
    %v1367 = vxor.u32 %v1359, 2147483648
    %v1368 = vmul.f32 %v1367, 1.442695
    %v1369 = vpow.pop %v1368
    %v1370 = vadd.f32 %v1369, 1.0
    %v1371 = vrcp.pop %v1370
    %v1372 = vmul.f32 1.0, %v1371
    %v1373 = vtanh.pop %v1359
    %v1375 = vrot.slane %v1249, 6
    %v1377 = vmul.f32 %v1365, %v1375
    %1379 = vrot.lane.b32.xlu0 %v1366, 64
    %v1380 = vpop.permute.xlu0 %1379
    %v1382 = vmul.f32 %v1365, %v1380
    %1384 = vrot.lane.b32.xlu0 %v1382, 32
    %v1385 = vpop.permute.xlu0 %1384
    %v1387 = vadd.f32 %v1377, %v1385
    %v1389 = vrot.slane %v1254, 2
    %v1391 = vmul.f32 %v1372, %v1389
    %1393 = vrot.lane.b32.xlu0 %v1373, 64
    %v1394 = vpop.permute.xlu0 %1393
    %v1396 = vmul.f32 %v1372, %v1394
    %1398 = vrot.lane.b32.xlu0 %v1396, 32
    %v1399 = vpop.permute.xlu0 %1398
    %v1401 = vadd.f32 %v1391, %v1399
    %v1402 = vtanh.pop %v1387
    %1404 = vrot.lane.b32.xlu0 %v1402, 64
    %v1405 = vpop.permute.xlu0 %1404
    %v1407 = vmul.f32 %v1365, %v1405
    %v1408 = vtanh.pop %v1401
    %1410 = vrot.lane.b32.xlu0 %v1408, 64
    %v1411 = vpop.permute.xlu0 %1410
    %v1413 = vmul.f32 %v1372, %v1411
    %v1415 = vrot.slane %v1248, 6
    %v1417 = vsel %vm582, %v1407, %v1415
    %v1418 = vsel %vm582, %v1387, %v1375
    %v1420 = vrot.slane %v1253, 2
    %v1422 = vsel %vm575, %v1413, %v1420
    %v1423 = vsel %vm575, %v1401, %v1389
    %v1424 = vsel %vm582, %v1407, 0.0
    %v1425 = vsel %vm575, %v1413, 0.0
    %v1426 = vpack.c.bf16 %v1417, %v1417
    %v1428 = vrot.slane %v1426, 1
    %1429 = vrot.lane.b32.xlu0 %v1428, 32
    %v1430 = vpop.permute.xlu0 %1429
    %v1432 = vsel %vm422, %v1430, 0
    %1434 = vmatprep.subr.bf16.mxu0 0
    %1435 = vmatpush1.bf16.msra.mxu0 %v418
    %1436 = vmatprep.subr.bf16.mxu0 0
    %1437 = vmatpush1.bf16.msra.mxu0 %v419
    %1438 = vmatprep.subr.bf16.mxu0 0
    %1439 = vmatpush1.bf16.msra.mxu0 0
    %1440 = vmatprep.subr.bf16.mxu0 0
    %1441 = vmatpush1.bf16.msra.mxu0 0
    %1442 = vmatprep.subr.bf16.mxu0 0
    %1443 = vmatpush1.bf16.msra.mxu0 0
    %1444 = vmatprep.subr.bf16.mxu0 0
    %1445 = vmatpush1.bf16.msra.mxu0 0
    %1446 = vmatprep.subr.bf16.mxu0 0
    %1447 = vmatpush1.bf16.msra.mxu0 0
    %1448 = vmatprep.subr.bf16.mxu0 0
    %1449 = vmatpush1.bf16.msra.mxu0 0
    %1450 = vmatprep.subr.bf16.mxu0 0
    %1451 = vmatpush1.bf16.msra.mxu0 0
    %1452 = vmatprep.subr.bf16.mxu0 0
    %1453 = vmatpush1.bf16.msra.mxu0 0
    %1454 = vmatprep.subr.bf16.mxu0 0
    %1455 = vmatpush1.bf16.msra.mxu0 0
    %1456 = vmatprep.subr.bf16.mxu0 0
    %1457 = vmatpush1.bf16.msra.mxu0 0
    %1458 = vmatprep.subr.bf16.mxu0 0
    %1459 = vmatpush1.bf16.msra.mxu0 0
    %1460 = vmatprep.subr.bf16.mxu0 0
    %1461 = vmatpush1.bf16.msra.mxu0 0
    %1462 = vmatprep.subr.bf16.mxu0 0
    %1463 = vmatpush1.bf16.msra.mxu0 0
    %1464 = vmatprep.subr.bf16.mxu0 0
    %1465 = vmatpush1.bf16.msra.mxu0 0
    %1466 = vmatprep.mubr.bf16.mxu0 0
    %1467 = vmatmul.mubr.bf16.gmra.mrb[0].mxu0 %v1432
    %v1468 = vpop.f32.mrb[0].mxu0
    %v1469 = vadd.f32 0.0, %v1468
    %v1470 = vpop.f32.mrb[0].mxu0
    %v1471 = vpop.f32.mrb[0].mxu0
    %v1472 = vpop.f32.mrb[0].mxu0
    %1473 = vdwg.mxu0
    %v1475 = vrot.slane %v1469, 4
    %v1477 = vadd.f32 %v394, %v1475
    %v1478 = vpack.c.bf16 %v1422, %v1422
    %v1480 = vrot.slane %v1478, 2
    %1481 = vrot.lane.b32.xlu0 %v1480, 32
    %v1482 = vpop.permute.xlu0 %1481
    %v1484 = vsel %vm422, %v1482, 0
    %1486 = vmatprep.subr.bf16.mxu0 0
    %1487 = vmatpush1.bf16.msra.mxu0 %v475
    %1488 = vmatprep.subr.bf16.mxu0 0
    %1489 = vmatpush1.bf16.msra.mxu0 %v476
    %1490 = vmatprep.subr.bf16.mxu0 0
    %1491 = vmatpush1.bf16.msra.mxu0 0
    %1492 = vmatprep.subr.bf16.mxu0 0
    %1493 = vmatpush1.bf16.msra.mxu0 0
    %1494 = vmatprep.subr.bf16.mxu0 0
    %1495 = vmatpush1.bf16.msra.mxu0 0
    %1496 = vmatprep.subr.bf16.mxu0 0
    %1497 = vmatpush1.bf16.msra.mxu0 0
    %1498 = vmatprep.subr.bf16.mxu0 0
    %1499 = vmatpush1.bf16.msra.mxu0 0
    %1500 = vmatprep.subr.bf16.mxu0 0
    %1501 = vmatpush1.bf16.msra.mxu0 0
    %1502 = vmatprep.subr.bf16.mxu0 0
    %1503 = vmatpush1.bf16.msra.mxu0 0
    %1504 = vmatprep.subr.bf16.mxu0 0
    %1505 = vmatpush1.bf16.msra.mxu0 0
    %1506 = vmatprep.subr.bf16.mxu0 0
    %1507 = vmatpush1.bf16.msra.mxu0 0
    %1508 = vmatprep.subr.bf16.mxu0 0
    %1509 = vmatpush1.bf16.msra.mxu0 0
    %1510 = vmatprep.subr.bf16.mxu0 0
    %1511 = vmatpush1.bf16.msra.mxu0 0
    %1512 = vmatprep.subr.bf16.mxu0 0
    %1513 = vmatpush1.bf16.msra.mxu0 0
    %1514 = vmatprep.subr.bf16.mxu0 0
    %1515 = vmatpush1.bf16.msra.mxu0 0
    %1516 = vmatprep.subr.bf16.mxu0 0
    %1517 = vmatpush1.bf16.msra.mxu0 0
    %1518 = vmatprep.mubr.bf16.mxu0 0
    %1519 = vmatmul.mubr.bf16.gmra.mrb[0].mxu0 %v1484
    %v1520 = vpop.f32.mrb[0].mxu0
    %v1521 = vadd.f32 0.0, %v1520
    %v1522 = vpop.f32.mrb[0].mxu0
    %v1523 = vpop.f32.mrb[0].mxu0
    %v1524 = vpop.f32.mrb[0].mxu0
    %1525 = vdwg.mxu0
    %v1527 = vrot.slane %v1521, 6
    %v1529 = vadd.f32 %v392, %v1527
    %v1530 = vxor.u32 %v1477, 2147483648
    %v1531 = vmul.f32 %v1530, 1.442695
    %v1532 = vpow.pop %v1531
    %v1533 = vadd.f32 %v1532, 1.0
    %v1534 = vrcp.pop %v1533
    %v1535 = vmul.f32 1.0, %v1534
    %v1536 = vtanh.pop %v1477
    %v1537 = vxor.u32 %v1529, 2147483648
    %v1538 = vmul.f32 %v1537, 1.442695
    %v1539 = vpow.pop %v1538
    %v1540 = vadd.f32 %v1539, 1.0
    %v1541 = vrcp.pop %v1540
    %v1542 = vmul.f32 1.0, %v1541
    %v1543 = vtanh.pop %v1529
    %v1545 = vrot.slane %v1418, 6
    %v1547 = vmul.f32 %v1535, %v1545
    %1549 = vrot.lane.b32.xlu0 %v1536, 64
    %v1550 = vpop.permute.xlu0 %1549
    %v1552 = vmul.f32 %v1535, %v1550
    %1554 = vrot.lane.b32.xlu0 %v1552, 32
    %v1555 = vpop.permute.xlu0 %1554
    %v1557 = vadd.f32 %v1547, %v1555
    %v1559 = vrot.slane %v1423, 2
    %v1561 = vmul.f32 %v1542, %v1559
    %1563 = vrot.lane.b32.xlu0 %v1543, 64
    %v1564 = vpop.permute.xlu0 %1563
    %v1566 = vmul.f32 %v1542, %v1564
    %1568 = vrot.lane.b32.xlu0 %v1566, 32
    %v1569 = vpop.permute.xlu0 %1568
    %v1571 = vadd.f32 %v1561, %v1569
    %v1572 = vtanh.pop %v1557
    %1574 = vrot.lane.b32.xlu0 %v1572, 64
    %v1575 = vpop.permute.xlu0 %1574
    %v1577 = vmul.f32 %v1535, %v1575
    %v1578 = vtanh.pop %v1571
    %1580 = vrot.lane.b32.xlu0 %v1578, 64
    %v1581 = vpop.permute.xlu0 %1580
    %v1583 = vmul.f32 %v1542, %v1581
    %v1585 = vrot.slane %v1417, 6
    %v1587 = vsel %vm582, %v1577, %v1585
    %v1588 = vsel %vm582, %v1557, %v1545
    %v1590 = vrot.slane %v1422, 2
    %v1592 = vsel %vm575, %v1583, %v1590
    %v1593 = vsel %vm575, %v1571, %v1559
    %v1594 = vsel %vm582, %v1577, 0.0
    %v1595 = vsel %vm575, %v1583, 0.0
    %v1596 = vpack.c.bf16 %v1587, %v1587
    %v1598 = vrot.slane %v1596, 2
    %1599 = vrot.lane.b32.xlu0 %v1598, 32
    %v1600 = vpop.permute.xlu0 %1599
    %v1602 = vsel %vm422, %v1600, 0
    %1604 = vmatprep.subr.bf16.mxu0 0
    %1605 = vmatpush1.bf16.msra.mxu0 %v418
    %1606 = vmatprep.subr.bf16.mxu0 0
    %1607 = vmatpush1.bf16.msra.mxu0 %v419
    %1608 = vmatprep.subr.bf16.mxu0 0
    %1609 = vmatpush1.bf16.msra.mxu0 0
    %1610 = vmatprep.subr.bf16.mxu0 0
    %1611 = vmatpush1.bf16.msra.mxu0 0
    %1612 = vmatprep.subr.bf16.mxu0 0
    %1613 = vmatpush1.bf16.msra.mxu0 0
    %1614 = vmatprep.subr.bf16.mxu0 0
    %1615 = vmatpush1.bf16.msra.mxu0 0
    %1616 = vmatprep.subr.bf16.mxu0 0
    %1617 = vmatpush1.bf16.msra.mxu0 0
    %1618 = vmatprep.subr.bf16.mxu0 0
    %1619 = vmatpush1.bf16.msra.mxu0 0
    %1620 = vmatprep.subr.bf16.mxu0 0
    %1621 = vmatpush1.bf16.msra.mxu0 0
    %1622 = vmatprep.subr.bf16.mxu0 0
    %1623 = vmatpush1.bf16.msra.mxu0 0
    %1624 = vmatprep.subr.bf16.mxu0 0
    %1625 = vmatpush1.bf16.msra.mxu0 0
    %1626 = vmatprep.subr.bf16.mxu0 0
    %1627 = vmatpush1.bf16.msra.mxu0 0
    %1628 = vmatprep.subr.bf16.mxu0 0
    %1629 = vmatpush1.bf16.msra.mxu0 0
    %1630 = vmatprep.subr.bf16.mxu0 0
    %1631 = vmatpush1.bf16.msra.mxu0 0
    %1632 = vmatprep.subr.bf16.mxu0 0
    %1633 = vmatpush1.bf16.msra.mxu0 0
    %1634 = vmatprep.subr.bf16.mxu0 0
    %1635 = vmatpush1.bf16.msra.mxu0 0
    %1636 = vmatprep.mubr.bf16.mxu0 0
    %1637 = vmatmul.mubr.bf16.gmra.mrb[0].mxu0 %v1602
    %v1638 = vpop.f32.mrb[0].mxu0
    %v1639 = vadd.f32 0.0, %v1638
    %v1640 = vpop.f32.mrb[0].mxu0
    %v1641 = vpop.f32.mrb[0].mxu0
    %v1642 = vpop.f32.mrb[0].mxu0
    %1643 = vdwg.mxu0
    %v1645 = vrot.slane %v1639, 2
    %v1647 = vadd.f32 %v394, %v1645
    %v1648 = vpack.c.bf16 %v1592, %v1592
    %v1650 = vrot.slane %v1648, 1
    %1651 = vrot.lane.b32.xlu0 %v1650, 32
    %v1652 = vpop.permute.xlu0 %1651
    %v1654 = vsel %vm422, %v1652, 0
    %1656 = vmatprep.subr.bf16.mxu0 0
    %1657 = vmatpush1.bf16.msra.mxu0 %v475
    %1658 = vmatprep.subr.bf16.mxu0 0
    %1659 = vmatpush1.bf16.msra.mxu0 %v476
    %1660 = vmatprep.subr.bf16.mxu0 0
    %1661 = vmatpush1.bf16.msra.mxu0 0
    %1662 = vmatprep.subr.bf16.mxu0 0
    %1663 = vmatpush1.bf16.msra.mxu0 0
    %1664 = vmatprep.subr.bf16.mxu0 0
    %1665 = vmatpush1.bf16.msra.mxu0 0
    %1666 = vmatprep.subr.bf16.mxu0 0
    %1667 = vmatpush1.bf16.msra.mxu0 0
    %1668 = vmatprep.subr.bf16.mxu0 0
    %1669 = vmatpush1.bf16.msra.mxu0 0
    %1670 = vmatprep.subr.bf16.mxu0 0
    %1671 = vmatpush1.bf16.msra.mxu0 0
    %1672 = vmatprep.subr.bf16.mxu0 0
    %1673 = vmatpush1.bf16.msra.mxu0 0
    %1674 = vmatprep.subr.bf16.mxu0 0
    %1675 = vmatpush1.bf16.msra.mxu0 0
    %1676 = vmatprep.subr.bf16.mxu0 0
    %1677 = vmatpush1.bf16.msra.mxu0 0
    %1678 = vmatprep.subr.bf16.mxu0 0
    %1679 = vmatpush1.bf16.msra.mxu0 0
    %1680 = vmatprep.subr.bf16.mxu0 0
    %1681 = vmatpush1.bf16.msra.mxu0 0
    %1682 = vmatprep.subr.bf16.mxu0 0
    %1683 = vmatpush1.bf16.msra.mxu0 0
    %1684 = vmatprep.subr.bf16.mxu0 0
    %1685 = vmatpush1.bf16.msra.mxu0 0
    %1686 = vmatprep.subr.bf16.mxu0 0
    %1687 = vmatpush1.bf16.msra.mxu0 0
    %1688 = vmatprep.mubr.bf16.mxu0 0
    %1689 = vmatmul.mubr.bf16.gmra.mrb[0].mxu0 %v1654
    %v1690 = vpop.f32.mrb[0].mxu0
    %v1691 = vadd.f32 0.0, %v1690
    %v1692 = vpop.f32.mrb[0].mxu0
    %v1693 = vpop.f32.mrb[0].mxu0
    %v1694 = vpop.f32.mrb[0].mxu0
    %1695 = vdwg.mxu0
    %v1696 = vadd.f32 %v392, %v1691
    %v1697 = vxor.u32 %v1647, 2147483648
    %v1698 = vmul.f32 %v1697, 1.442695
    %v1699 = vpow.pop %v1698
    %v1700 = vadd.f32 %v1699, 1.0
    %v1701 = vrcp.pop %v1700
    %v1702 = vmul.f32 1.0, %v1701
    %v1703 = vtanh.pop %v1647
    %v1704 = vxor.u32 %v1696, 2147483648
    %v1705 = vmul.f32 %v1704, 1.442695
    %v1706 = vpow.pop %v1705
    %v1707 = vadd.f32 %v1706, 1.0
    %v1708 = vrcp.pop %v1707
    %v1709 = vmul.f32 1.0, %v1708
    %v1710 = vtanh.pop %v1696
    %v1712 = vrot.slane %v1588, 6
    %v1714 = vmul.f32 %v1702, %v1712
    %1716 = vrot.lane.b32.xlu0 %v1703, 64
    %v1717 = vpop.permute.xlu0 %1716
    %v1719 = vmul.f32 %v1702, %v1717
    %1721 = vrot.lane.b32.xlu0 %v1719, 32
    %v1722 = vpop.permute.xlu0 %1721
    %v1724 = vadd.f32 %v1714, %v1722
    %v1726 = vrot.slane %v1593, 2
    %v1728 = vmul.f32 %v1709, %v1726
    %1730 = vrot.lane.b32.xlu0 %v1710, 64
    %v1731 = vpop.permute.xlu0 %1730
    %v1733 = vmul.f32 %v1709, %v1731
    %1735 = vrot.lane.b32.xlu0 %v1733, 32
    %v1736 = vpop.permute.xlu0 %1735
    %v1738 = vadd.f32 %v1728, %v1736
    %v1739 = vtanh.pop %v1724
    %1741 = vrot.lane.b32.xlu0 %v1739, 64
    %v1742 = vpop.permute.xlu0 %1741
    %v1744 = vmul.f32 %v1702, %v1742
    %v1745 = vtanh.pop %v1738
    %1747 = vrot.lane.b32.xlu0 %v1745, 64
    %v1748 = vpop.permute.xlu0 %1747
    %v1750 = vmul.f32 %v1709, %v1748
    %v1751 = vsel %vm582, %v1744, 0.0
    %v1752 = vsel %vm575, %v1750, 0.0
    %1753 = vrot.lane.b32.xlu0 %v576, 32
    %v1754 = vpop.permute.xlu0 %1753
    %1757 = vrot.lane.b32.xlu0 %v1752, 64
    %v1758 = vpop.permute.xlu0 %1757
    %v1760 = vsel %vm422, %v1754, %v1758
    %1762 = vrot.lane.b32.xlu0 %v752, 32
    %v1763 = vpop.permute.xlu0 %1762
    %1766 = vrot.lane.b32.xlu0 %v1595, 64
    %v1767 = vpop.permute.xlu0 %1766
    %v1769 = vsel %vm422, %v1763, %v1767
    %1771 = vrot.lane.b32.xlu0 %v922, 32
    %v1772 = vpop.permute.xlu0 %1771
    %1775 = vrot.lane.b32.xlu0 %v1425, 64
    %v1776 = vpop.permute.xlu0 %1775
    %v1778 = vsel %vm422, %v1772, %v1776
    %1780 = vrot.lane.b32.xlu0 %v1089, 32
    %v1781 = vpop.permute.xlu0 %1780
    %1784 = vrot.lane.b32.xlu0 %v1256, 64
    %v1785 = vpop.permute.xlu0 %1784
    %v1787 = vsel %vm422, %v1781, %v1785
    %1789 = vrot.lane.b32.xlu0 %v1255, 32
    %v1790 = vpop.permute.xlu0 %1789
    %1793 = vrot.lane.b32.xlu0 %v1090, 64
    %v1794 = vpop.permute.xlu0 %1793
    %v1796 = vsel %vm422, %v1790, %v1794
    %1798 = vrot.lane.b32.xlu0 %v1424, 32
    %v1799 = vpop.permute.xlu0 %1798
    %1802 = vrot.lane.b32.xlu0 %v923, 64
    %v1803 = vpop.permute.xlu0 %1802
    %v1805 = vsel %vm422, %v1799, %v1803
    %1807 = vrot.lane.b32.xlu0 %v1594, 32
    %v1808 = vpop.permute.xlu0 %1807
    %1811 = vrot.lane.b32.xlu0 %v753, 64
    %v1812 = vpop.permute.xlu0 %1811
    %v1814 = vsel %vm422, %v1808, %v1812
    %1816 = vrot.lane.b32.xlu0 %v1751, 32
    %v1817 = vpop.permute.xlu0 %1816
    %1819 = vrot.lane.b32.xlu0 %v583, 64
    %v1820 = vpop.permute.xlu0 %1819
    %v1822 = vsel %vm422, %v1817, %v1820
    %vm1823 = vcmask 1041408
    %v1824 = vsel %vm1823, %v1760, %v1769
    %vm1825 = vcmask 1043456
    %v1826 = vsel %vm1825, %v1824, %v1778
    %v1827 = vsel %vm305, %v1826, %v1787
    %v1828 = vsel %vm1823, %v1796, %v1805
    %v1829 = vsel %vm1825, %v1828, %v1814
    %v1830 = vsel %vm305, %v1829, %v1822
    %v1831 = vpack.c.bf16 %v1830, %v1827
    %v1832 = vld [vmem:[%s6] sm:$0xf]
    %v1833 = vld [vmem:[%s6 + $0x4] sm:$0xf]
    %v1834 = vld [vmem:[%s6 + $0x8] sm:$0xf]
    %v1835 = vld [vmem:[%s6 + $0xc] sm:$0xf]
    %v1836 = vld [vmem:[%s6 + $0x10] sm:$0xf]
    %v1837 = vld [vmem:[%s6 + $0x14] sm:$0xf]
    %v1838 = vld [vmem:[%s6 + $0x18] sm:$0xf]
    %v1839 = vld [vmem:[%s6 + $0x1c] sm:$0xf]
    %v1840 = vld [vmem:[%s7] sm:$0x1]
    %v1842 = vlaneseq
    %v1843 = vshrl.u32 %v1842, 7
    %v1844 = vsub.s32 0, %v1843
    %v1845 = vrot.slane %v1840, %v1844
    %v1855 = vunpack.c.l.b16 %v1832
    %v1856 = vunpack.c.l.b16 %v1833
    %v1857 = vunpack.c.l.b16 %v1834
    %v1858 = vunpack.c.l.b16 %v1835
    %v1859 = vunpack.c.l.b16 %v1836
    %v1860 = vunpack.c.l.b16 %v1837
    %v1861 = vunpack.c.l.b16 %v1838
    %v1862 = vunpack.c.l.b16 %v1839
    %v1863 = vpack.c.b16 %v1856, %v1855
    %v1864 = vpack.c.b16 %v1858, %v1857
    %v1865 = vpack.c.b16 %v1860, %v1859
    %v1866 = vpack.c.b16 %v1862, %v1861
    %vm1871 = vcmask 523264
    %v1873 = vsel %vm1871, %v1831, 0
    %1875 = vmatprep.subr.bf16.mxu0 0
    %1876 = vmatpush1.bf16.msra.mxu0 %v1863
    %1877 = vmatprep.subr.bf16.mxu0 0
    %1878 = vmatpush1.bf16.msra.mxu0 %v1864
    %1879 = vmatprep.subr.bf16.mxu0 0
    %1880 = vmatpush1.bf16.msra.mxu0 %v1865
    %1881 = vmatprep.subr.bf16.mxu0 0
    %1882 = vmatpush1.bf16.msra.mxu0 %v1866
    %1883 = vmatprep.subr.bf16.mxu0 0
    %1884 = vmatpush1.bf16.msra.mxu0 0
    %1885 = vmatprep.subr.bf16.mxu0 0
    %1886 = vmatpush1.bf16.msra.mxu0 0
    %1887 = vmatprep.subr.bf16.mxu0 0
    %1888 = vmatpush1.bf16.msra.mxu0 0
    %1889 = vmatprep.subr.bf16.mxu0 0
    %1890 = vmatpush1.bf16.msra.mxu0 0
    %1891 = vmatprep.subr.bf16.mxu0 0
    %1892 = vmatpush1.bf16.msra.mxu0 0
    %1893 = vmatprep.subr.bf16.mxu0 0
    %1894 = vmatpush1.bf16.msra.mxu0 0
    %1895 = vmatprep.subr.bf16.mxu0 0
    %1896 = vmatpush1.bf16.msra.mxu0 0
    %1897 = vmatprep.subr.bf16.mxu0 0
    %1898 = vmatpush1.bf16.msra.mxu0 0
    %1899 = vmatprep.subr.bf16.mxu0 0
    %1900 = vmatpush1.bf16.msra.mxu0 0
    %1901 = vmatprep.subr.bf16.mxu0 0
    %1902 = vmatpush1.bf16.msra.mxu0 0
    %1903 = vmatprep.subr.bf16.mxu0 0
    %1904 = vmatpush1.bf16.msra.mxu0 0
    %1905 = vmatprep.subr.bf16.mxu0 0
    %1906 = vmatpush1.bf16.msra.mxu0 0
    %1907 = vmatprep.mubr.bf16.mxu0 0
    %1908 = vmatmul.mubr.bf16.gmra.mrb[0].mxu0 %v1873
    %v1909 = vpop.f32.mrb[0].mxu0
    %v1910 = vadd.f32 %v1845, %v1909
    %v1911 = vpop.f32.mrb[0].mxu0
    %v1912 = vpop.f32.mrb[0].mxu0
    %v1913 = vadd.f32 %v1845, %v1912
    %v1914 = vpop.f32.mrb[0].mxu0
    %1915 = vdwg.mxu0
    %vm1916 = vcmask 39936
    %1917 = vst.msk [vmem:[%s8] sm:$0xff] %vm1916, %v1910
    %1918 = vst.msk [vmem:[%s8 + $0x8] sm:$0xff] %vm1916, %v1913
    // Predicated region
    $region38: #{tpu_custom_call.1} parent=1 // pred_check
      _
    $region39: #{tpu_custom_call.1} parent=1 // pred_check_branch
      %1920 = sbr.rel (0) target = $region41
    $region40: #{tpu_custom_call.1} parent=1 // pred_region
      _
    $region41: #{tpu_custom_call.1} parent=1 // pred_fallthru
      _
    // Predicated region
    $region42: #{tpu_custom_call.1} parent=1 // pred_check
      _
    $region43: #{tpu_custom_call.1} parent=1 // pred_check_branch
      %1922 = sbr.rel (0) target = $region45
    $region44: #{tpu_custom_call.1} parent=1 // pred_region
      _
    $region45: #{tpu_custom_call.1} parent=1 // pred_fallthru
      _
    %1923 = vsyncpa [#allocation3], 1

</llo_original>
